<compile_context>
chip_gen: v5e
topology: v5e:2x2
jax: 0.10.0
libtpu: 0.0.40
codegen_flags: <defaults>
</compile_context>

<pallas_src>
import functools

import numpy as np
import jax
import jax.numpy as jnp
from jax.experimental import pallas as pl
from jax.experimental.pallas import tpu as pltpu


_LANE = 128
_SUBLANE = 8
_TARGET_ROWS = 256          # target MXU M rows per grid step (Bt * N)
_MAX_UNROLL_BLOCKS = 6      # static Python unroll up to this many residual blocks


def _round_up(x, m):
  return ((x + m - 1) // m) * m


def _pad_to(a, shape):
  pads = [(0, s - d) for d, s in zip(a.shape, shape)]
  return jnp.pad(a, pads)


# tanh-approximate GELU: the tanh issues on the EUP slot (free next to MXU/VPU
# work).  Max abs deviation from torch's exact-erf GELU is ~5e-4.
_SQRT_2_OVER_PI = 0.7978845608028654


def _gelu(x):
  return 0.5 * x * (1.0 + jnp.tanh(_SQRT_2_OVER_PI * (x + 0.044715 * x * x * x)))


# -----------------------------------------------------------------------------
# Fused kernel: conv1(k=1) + residual BasicBlock1d chain + fc1, Bt batch
# elements per grid step.  All weights are grid-invariant VMEM residents.
#   u    : [Bt, N, T_hist]  (compute dtype)
#   w1   : [T_hist, C]      (compute dtype)  conv1 weight
#   b1   : [Bt, 1, C]       (f32)            conv1 bias + dx*w_dx + dt*w_dt
#   bw*  : [NB, 3C, C]      (compute dtype)  tap-stacked block conv weights
#   bb*  : [NB, 1, C]       (f32)
#   fcw  : [C, TF]          (compute dtype)  TF == time_future exactly
#   fcb  : [1, TF]          (f32)
#   out  : [Bt, N, TF]      (f32)
# -----------------------------------------------------------------------------
def _resnet_fused_kernel(u_ref, w1_ref, b1_ref, bw1_ref, bb1_ref,
                         bw2_ref, bb2_ref, fcw_ref, fcb_ref, o_ref,
                         *, fold_taps):
  Bt, N, _ = u_ref.shape
  NB = bw1_ref.shape[0]
  C = w1_ref.shape[1]
  TF = fcw_ref.shape[1]
  cdt = bw1_ref.dtype          # MXU-input dtype (bf16 or f32); accumulation f32
  M = Bt * N                   # merged (batch, spatial) rows for the matmuls

  # conv1 (kernel_size=1) as one matmul over merged rows; the dx/dt spacetime
  # embedding is already folded into the per-batch bias row b1.
  x = jnp.dot(u_ref[...].reshape(M, -1), w1_ref[...],
              preferred_element_type=jnp.float32).reshape(Bt, N, C)
  x = _gelu(x + b1_ref[...])                       # [Bt, N, C] f32

  def circ_conv3(inp_f32, w, b_row):
    # Circular k=3 conv.  Cast ONCE to the MXU dtype before the rolls/concat.
    inp = inp_f32.astype(cdt)
    left = jnp.roll(inp, 1, axis=1)                # inp[:, (n-1) % N]
    right = jnp.roll(inp, -1, axis=1)              # inp[:, (n+1) % N]
    if fold_taps:
      # One deep-K MXU matmul: [M, 3C] x [3C, C].
      folded = jnp.concatenate([left, inp, right], axis=-1).reshape(M, 3 * C)
      out = jnp.dot(folded, w, preferred_element_type=jnp.float32)
    else:
      # Three accumulating matmuls with static weight slices: the [M, 3C]
      # folded operand is never materialized (helps v5e's single vst slot, and
      # avoids unaligned lane concat when C < 128).
      out = (jnp.dot(left.reshape(M, C), w[0:C],
                     preferred_element_type=jnp.float32)
             + jnp.dot(inp.reshape(M, C), w[C:2 * C],
                       preferred_element_type=jnp.float32)
             + jnp.dot(right.reshape(M, C), w[2 * C:3 * C],
                       preferred_element_type=jnp.float32))
    return out.reshape(Bt, N, C) + b_row           # f32

  def one_block(xin, w1b, b1b, w2b, b2b):
    h = _gelu(circ_conv3(xin, w1b, b1b))
    y = circ_conv3(h, w2b, b2b) + xin              # identity shortcut (f32)
    return _gelu(y)

  if NB <= _MAX_UNROLL_BLOCKS:
    for i in range(NB):                            # static unroll (small NB)
      x = one_block(x, bw1_ref[i], bb1_ref[i], bw2_ref[i], bb2_ref[i])
  else:
    # Bound live ranges / compile time for deep residual chains.
    def body(i, xc):
      return one_block(xc, bw1_ref[i], bb1_ref[i], bw2_ref[i], bb2_ref[i])
    x = jax.lax.fori_loop(0, NB, body, x)

  out = jnp.dot(x.reshape(M, C).astype(cdt), fcw_ref[...],
                preferred_element_type=jnp.float32) + fcb_ref[...]
  o_ref[...] = out.reshape(Bt, N, TF).astype(o_ref.dtype)


# -----------------------------------------------------------------------------
# Generation-aware knobs.
# -----------------------------------------------------------------------------
def _vmem_budget_bytes():
  """~7/8 of physical VMEM: ~56 MiB on v7x, ~112 MiB on v5e/v6e."""
  try:
    cap = int(pltpu.get_tpu_info().vmem_capacity_bytes)
  except Exception:
    cap = 64 * 2 ** 20                             # conservative v7x-sized fallback
  return (7 * cap) // 8


def _default_fold_taps(C):
  if C % _LANE != 0:
    return False        # tiny widths: accumulating dots beat an unaligned fold
  try:
    kind = jax.devices()[0].device_kind.lower()
  except Exception:
    return True
  # v5e and older: 1 vst slot/bundle -> skip materializing the folded operand.
  return not any(v in kind for v in ("v2", "v3", "v4", "v5"))


# -----------------------------------------------------------------------------
# Forward wrapper: one pallas_call for the whole network.
# -----------------------------------------------------------------------------
def resnet_forward(kp, u, dx, dt, *, compute_dtype=jnp.bfloat16, fold_taps=None):
  """u: [B, N, time_history], dx/dt: [B]  ->  [B, N, time_future] (f32)."""
  B, N, t_hist = u.shape
  C = kp["fc_w"].shape[0]
  TF = kp["fc_w"].shape[1]                         # == time_future (no padding)
  NB = kp["bw1"].shape[0]
  cdt = jnp.dtype(compute_dtype)
  if fold_taps is None:
    fold_taps = _default_fold_taps(C)

  # Fused spacetime embedding:
  #   conv1(cat(u, dx, dt)) == u @ W_u + (b + dx * w_dx + dt * w_dt)
  b1 = (kp["conv1_b"][None, :]
        + dx.astype(jnp.float32)[:, None] * kp["w_dx"][None, :]
        + dt.astype(jnp.float32)[:, None] * kp["w_dt"][None, :]).reshape(B, 1, C)

  u_c = u.astype(cdt)
  w1 = kp["w1"].astype(cdt)
  bw1 = kp["bw1"].astype(cdt)
  bw2 = kp["bw2"].astype(cdt)
  fcw = kp["fc_w"].astype(cdt)
  bb1, bb2, fcb = kp["bb1"], kp["bb2"], kp["fc_b"]

  weight_ops = (w1, bw1, bb1, bw2, bb2, fcw, fcb)
  weight_bytes = sum(int(a.size) * a.dtype.itemsize for a in weight_ops)
  csize = cdt.itemsize
  vmem_budget = _vmem_budget_bytes()

  def step_bytes(bt):
    # Pipeline blocks (double-buffered) + in-kernel activation working set,
    # including the rolled copies / folded operand in the compute dtype.
    blk = bt * N * t_hist * csize + bt * C * 4 + bt * N * TF * 4
    act = bt * N * C * 4 * 3                       # x / h / y f32 temporaries
    act += bt * N * 3 * C * csize * 2              # rolls (+ folded operand)
    return 2 * (blk + weight_bytes) + act

  # Merge enough batch elements per step to fill the MXU M dim (~256 rows),
  # within the VMEM budget; rebalance so batch padding is minimal.
  bt = max(1, min(B, -(-_TARGET_ROWS // max(N, 1))))
  while bt > 1 and step_bytes(bt) > vmem_budget:
    bt -= 1
  g = -(-B // bt)
  bt = -(-B // g)
  b_pad = g * bt
  # TODO(synk): on v7x (2 TensorCores) prefer an even grid length g for balance.

  if b_pad != B:
    u_c = _pad_to(u_c, (b_pad, N, t_hist))
    b1 = _pad_to(b1, (b_pad, 1, C))

  operands = (u_c, w1, b1, bw1, bb1, bw2, bb2, fcw, fcb)
  vmem_limit = int(min(vmem_budget, max(32 * 2 ** 20, step_bytes(bt))))

  kernel = functools.partial(_resnet_fused_kernel, fold_taps=fold_taps)
  out = pl.pallas_call(
      kernel,
      out_shape=jax.ShapeDtypeStruct((b_pad, N, TF), jnp.float32),
      grid=(g,),
      in_specs=[
          pl.BlockSpec((bt, N, t_hist), lambda b: (b, 0, 0)),     # u (bt batches)
          pl.BlockSpec((t_hist, C), lambda b: (0, 0)),            # conv1 weight
          pl.BlockSpec((bt, 1, C), lambda b: (b, 0, 0)),          # conv1 bias rows
          pl.BlockSpec((NB, 3 * C, C), lambda b: (0, 0, 0)),      # block conv1 w
          pl.BlockSpec((NB, 1, C), lambda b: (0, 0, 0)),          # block conv1 b
          pl.BlockSpec((NB, 3 * C, C), lambda b: (0, 0, 0)),      # block conv2 w
          pl.BlockSpec((NB, 1, C), lambda b: (0, 0, 0)),          # block conv2 b
          pl.BlockSpec((C, TF), lambda b: (0, 0)),                # fc1 weight
          pl.BlockSpec((1, TF), lambda b: (0, 0)),                # fc1 bias
      ],
      out_specs=pl.BlockSpec((bt, N, TF), lambda b: (b, 0, 0)),
      compiler_params=pltpu.CompilerParams(
          dimension_semantics=("parallel",),
          vmem_limit_bytes=vmem_limit),
  )(*operands)
  return out if b_pad == B else out[:B]


# -----------------------------------------------------------------------------
# Parameter setup (deterministic, PyTorch-default-style uniform init), stored in
# PyTorch layouts and converted once into padded kernel layouts.
# -----------------------------------------------------------------------------
def init_torch_params(key, t_hist, t_fut, width, num_blocks, embed_spacetime):
  cin = t_hist + (2 if embed_spacetime else 0)
  keys = iter(jax.random.split(key, 128))

  def unif(shape, fan_in):
    bound = 1.0 / (float(fan_in) ** 0.5)
    return jax.random.uniform(next(keys), shape, jnp.float32, -bound, bound)

  params = {
      "conv1_w": unif((width, cin, 1), cin),        # Conv1d(cin, width, k=1)
      "conv1_b": unif((width,), cin),
      "blocks": [],
      "fc1_w": unif((t_fut, width), width),         # Linear(width, t_fut)
      "fc1_b": unif((t_fut,), width),
  }
  for _ in range(sum(num_blocks)):
    params["blocks"].append({
        "w1": unif((width, width, 3), width * 3),   # Conv1d(width, width, k=3)
        "b1": unif((width,), width * 3),
        "w2": unif((width, width, 3), width * 3),
        "b2": unif((width,), width * 3),
    })
  return params


def to_kernel_params(tp, t_hist, embed_spacetime):
  width = tp["conv1_w"].shape[0]
  t_fut = tp["fc1_w"].shape[0]
  # Pad channels to a 128-lane multiple only when width >= 128; otherwise pad
  # just to the sublane multiple so the conv contraction K stays ~3*width.
  C = _round_up(width, _LANE) if width >= _LANE else _round_up(width, _SUBLANE)

  conv1_w2d = tp["conv1_w"][:, :, 0]                # [width, cin]
  w1 = _pad_to(conv1_w2d[:, :t_hist].T, (t_hist, C))
  if embed_spacetime:
    w_dx = _pad_to(conv1_w2d[:, t_hist], (C,))
    w_dt = _pad_to(conv1_w2d[:, t_hist + 1], (C,))
  else:
    w_dx = jnp.zeros((C,), jnp.float32)
    w_dt = jnp.zeros((C,), jnp.float32)
  conv1_b = _pad_to(tp["conv1_b"], (C,))

  def fold(w):                                      # torch Conv1d weight [out, in, 3]
    taps = [_pad_to(w[:, :, t].T, (C, C)) for t in range(3)]
    return jnp.concatenate(taps, axis=0)            # [3C, C] tap-stacked weight

  bw1 = jnp.stack([fold(b["w1"]) for b in tp["blocks"]])
  bb1 = jnp.stack([_pad_to(b["b1"], (C,)).reshape(1, C) for b in tp["blocks"]])
  bw2 = jnp.stack([fold(b["w2"]) for b in tp["blocks"]])
  bb2 = jnp.stack([_pad_to(b["b2"], (C,)).reshape(1, C) for b in tp["blocks"]])

  fc_w = _pad_to(tp["fc1_w"].T, (C, t_fut))         # [C, t_fut] (no lane padding)
  fc_b = tp["fc1_b"].reshape(1, t_fut)

  return dict(w1=w1, w_dx=w_dx, w_dt=w_dt, conv1_b=conv1_b,
              bw1=bw1, bb1=bb1, bw2=bw2, bb2=bb2,
              fc_w=fc_w, fc_b=fc_b)


# -----------------------------------------------------------------------------
# Pure-JAX reference (mirrors the PyTorch NCL code path, exact erf GELU).
# -----------------------------------------------------------------------------
def _conv1d_circ_ref(x, w, b):
  xp = jnp.concatenate([x[:, :, -1:], x, x[:, :, :1]], axis=-1)
  y = jax.lax.conv_general_dilated(
      xp, w, window_strides=(1,), padding="VALID",
      dimension_numbers=("NCH", "OIH", "NCH"))
  return y + b[None, :, None]


def reference_forward(tp, u, dx, dt):
  B, N, _ = u.shape
  x = jnp.concatenate(
      [u,
       jnp.broadcast_to(dx[:, None, None], (B, N, 1)),
       jnp.broadcast_to(dt[:, None, None], (B, N, 1))], axis=-1)
  x = jnp.transpose(x, (0, 2, 1))                   # [B, Cin, N]
  x = jnp.einsum("oik,bin->bon", tp["conv1_w"], x) + tp["conv1_b"][None, :, None]
  x = jax.nn.gelu(x, approximate=False)
  for blk in tp["blocks"]:
    h = jax.nn.gelu(_conv1d_circ_ref(x, blk["w1"], blk["b1"]), approximate=False)
    h = _conv1d_circ_ref(h, blk["w2"], blk["b2"])
    x = jax.nn.gelu(h + x, approximate=False)
  x = jnp.transpose(x, (0, 2, 1))                   # [B, N, width]
  return jnp.einsum("bnc,fc->bnf", x, tp["fc1_w"]) + tp["fc1_b"]


if __name__ == "__main__":
  B, NX, T_HIST, T_FUT, WIDTH = 2, 16, 8, 4, 32
  NUM_BLOCKS = [1, 1, 1, 1]

  key = jax.random.PRNGKey(0)
  k_u, k_dx, k_dt, k_p = jax.random.split(key, 4)
  u = jax.random.normal(k_u, (B, NX, T_HIST), jnp.float32)
  dx = jax.random.uniform(k_dx, (B,), jnp.float32, 0.01, 0.1)
  dt = jax.random.uniform(k_dt, (B,), jnp.float32, 0.01, 0.1)

  tparams = init_torch_params(k_p, T_HIST, T_FUT, WIDTH, NUM_BLOCKS,
                              embed_spacetime=True)
  kparams = to_kernel_params(tparams, T_HIST, embed_spacetime=True)

  ref = jax.block_until_ready(reference_forward(tparams, u, dx, dt))

  # Default path: bf16 MXU inputs, f32 accumulation / residual / GELU.
  out = jax.block_until_ready(resnet_forward(kparams, u, dx, dt))
  assert out.shape == (B, NX, T_FUT), out.shape
  np.testing.assert_allclose(np.asarray(out), np.asarray(ref),
                             rtol=1e-1, atol=5e-2)

  # f32 MXU-input path validated tightly against the exact-erf reference
  # (remaining deviation is the tanh-GELU approximation, ~5e-4 abs).
  out_f32 = jax.block_until_ready(
      resnet_forward(kparams, u, dx, dt, compute_dtype=jnp.float32))
  np.testing.assert_allclose(np.asarray(out_f32), np.asarray(ref),
                             rtol=5e-2, atol=1e-2)

  print("KERNEL_OK")
</pallas_src>

<mosaic_0001>
module attributes {stable_mosaic.version = 11 : i64} {
  func.func @_resnet_fused_kernel(%arg0: i32, %arg1: memref<2x16x8xbf16, #tpu.memory_space<vmem>>, %arg2: memref<8x32xbf16, #tpu.memory_space<vmem>>, %arg3: memref<2x1x32xf32, #tpu.memory_space<vmem>>, %arg4: memref<4x96x32xbf16, #tpu.memory_space<vmem>>, %arg5: memref<4x1x32xf32, #tpu.memory_space<vmem>>, %arg6: memref<4x96x32xbf16, #tpu.memory_space<vmem>>, %arg7: memref<4x1x32xf32, #tpu.memory_space<vmem>>, %arg8: memref<32x4xbf16, #tpu.memory_space<vmem>>, %arg9: memref<1x4xf32, #tpu.memory_space<vmem>>, %arg10: memref<2x16x4xf32, #tpu.memory_space<vmem>>) attributes {dimension_semantics = [#tpu.dimension_semantics<parallel>], iteration_bounds = array<i64: 1>, scalar_prefetch = 0 : i64, scratch_operands = 0 : i64, tpu.core_type = #tpu.core_type<tc>, window_params = [{transform_indices = @transform_0, window_bounds = array<i64: 2, 16, 8>}, {pipeline_mode = #tpu.pipeline_mode<synchronous>, transform_indices = @transform_1, window_bounds = array<i64: 8, 32>}, {transform_indices = @transform_2, window_bounds = array<i64: 2, 1, 32>}, {pipeline_mode = #tpu.pipeline_mode<synchronous>, transform_indices = @transform_3, window_bounds = array<i64: 4, 96, 32>}, {pipeline_mode = #tpu.pipeline_mode<synchronous>, transform_indices = @transform_4, window_bounds = array<i64: 4, 1, 32>}, {pipeline_mode = #tpu.pipeline_mode<synchronous>, transform_indices = @transform_5, window_bounds = array<i64: 4, 96, 32>}, {pipeline_mode = #tpu.pipeline_mode<synchronous>, transform_indices = @transform_6, window_bounds = array<i64: 4, 1, 32>}, {pipeline_mode = #tpu.pipeline_mode<synchronous>, transform_indices = @transform_7, window_bounds = array<i64: 32, 4>}, {pipeline_mode = #tpu.pipeline_mode<synchronous>, transform_indices = @transform_8, window_bounds = array<i64: 1, 4>}, {transform_indices = @transform_9, window_bounds = array<i64: 2, 16, 4>}]} {
    %c0 = arith.constant 0 : index
    %c0_0 = arith.constant 0 : index
    %c0_1 = arith.constant 0 : index
    %0 = vector.load %arg1[%c0, %c0_0, %c0_1] : memref<2x16x8xbf16, #tpu.memory_space<vmem>>, vector<2x16x8xbf16>
    %1 = vector.shape_cast %0 : vector<2x16x8xbf16> to vector<32x8xbf16>
    %c0_2 = arith.constant 0 : index
    %c0_3 = arith.constant 0 : index
    %2 = vector.load %arg2[%c0_2, %c0_3] : memref<8x32xbf16, #tpu.memory_space<vmem>>, vector<8x32xbf16>
    %cst = arith.constant dense<0.000000e+00> : vector<32x32xf32>
    %3 = tpu.matmul %1, %2, %cst {dimension_numbers = #tpu.dot_dimension_numbers<[1], [0], [0], [1], [0, 0, 1, 1], [], []>} : vector<32x8xbf16>, vector<8x32xbf16>, vector<32x32xf32> -> vector<32x32xf32>
    %4 = vector.shape_cast %3 : vector<32x32xf32> to vector<2x16x32xf32>
    %c0_4 = arith.constant 0 : index
    %c0_5 = arith.constant 0 : index
    %c0_6 = arith.constant 0 : index
    %5 = vector.load %arg3[%c0_4, %c0_5, %c0_6] : memref<2x1x32xf32, #tpu.memory_space<vmem>>, vector<2x1x32xf32>
    %6 = vector.broadcast %5 : vector<2x1x32xf32> to vector<2x16x32xf32>
    %7 = arith.addf %4, %6 : vector<2x16x32xf32>
    %cst_7 = arith.constant 5.000000e-01 : f32
    %8 = vector.broadcast %cst_7 : f32 to vector<2x16x32xf32>
    %9 = arith.mulf %8, %7 : vector<2x16x32xf32>
    %cst_8 = arith.constant 4.471500e-02 : f32
    %10 = vector.broadcast %cst_8 : f32 to vector<2x16x32xf32>
    %11 = arith.mulf %10, %7 : vector<2x16x32xf32>
    %12 = arith.mulf %11, %7 : vector<2x16x32xf32>
    %13 = arith.mulf %12, %7 : vector<2x16x32xf32>
    %14 = arith.addf %7, %13 : vector<2x16x32xf32>
    %cst_9 = arith.constant 0.797884583 : f32
    %15 = vector.broadcast %cst_9 : f32 to vector<2x16x32xf32>
    %16 = arith.mulf %15, %14 : vector<2x16x32xf32>
    %17 = math.tanh %16 : vector<2x16x32xf32>
    %cst_10 = arith.constant 1.000000e+00 : f32
    %18 = vector.broadcast %cst_10 : f32 to vector<2x16x32xf32>
    %19 = arith.addf %18, %17 : vector<2x16x32xf32>
    %20 = arith.mulf %9, %19 : vector<2x16x32xf32>
    %c0_11 = arith.constant 0 : index
    %c0_12 = arith.constant 0 : index
    %c0_13 = arith.constant 0 : index
    %21 = vector.load %arg4[%c0_11, %c0_12, %c0_13] : memref<4x96x32xbf16, #tpu.memory_space<vmem>>, vector<1x96x32xbf16>
    %22 = vector.shape_cast %21 : vector<1x96x32xbf16> to vector<96x32xbf16>
    %c0_14 = arith.constant 0 : index
    %c0_15 = arith.constant 0 : index
    %c0_16 = arith.constant 0 : index
    %23 = vector.load %arg5[%c0_14, %c0_15, %c0_16] : memref<4x1x32xf32, #tpu.memory_space<vmem>>, vector<1x1x32xf32>
    %24 = vector.shape_cast %23 : vector<1x1x32xf32> to vector<1x32xf32>
    %c0_17 = arith.constant 0 : index
    %c0_18 = arith.constant 0 : index
    %c0_19 = arith.constant 0 : index
    %25 = vector.load %arg6[%c0_17, %c0_18, %c0_19] : memref<4x96x32xbf16, #tpu.memory_space<vmem>>, vector<1x96x32xbf16>
    %26 = vector.shape_cast %25 : vector<1x96x32xbf16> to vector<96x32xbf16>
    %c0_20 = arith.constant 0 : index
    %c0_21 = arith.constant 0 : index
    %c0_22 = arith.constant 0 : index
    %27 = vector.load %arg7[%c0_20, %c0_21, %c0_22] : memref<4x1x32xf32, #tpu.memory_space<vmem>>, vector<1x1x32xf32>
    %28 = vector.shape_cast %27 : vector<1x1x32xf32> to vector<1x32xf32>
    %29 = arith.truncf %20 : vector<2x16x32xf32> to vector<2x16x32xbf16>
    %30 = vector.extract_strided_slice %29 {offsets = [0, 15, 0], sizes = [2, 1, 32], strides = [1, 1, 1]} : vector<2x16x32xbf16> to vector<2x1x32xbf16>
    %31 = vector.extract_strided_slice %29 {offsets = [0, 0, 0], sizes = [2, 15, 32], strides = [1, 1, 1]} : vector<2x16x32xbf16> to vector<2x15x32xbf16>
    %32 = tpu.concatenate %30, %31 in 1 : vector<2x1x32xbf16>, vector<2x15x32xbf16> -> vector<2x16x32xbf16>
    %33 = vector.extract_strided_slice %29 {offsets = [0, 1, 0], sizes = [2, 15, 32], strides = [1, 1, 1]} : vector<2x16x32xbf16> to vector<2x15x32xbf16>
    %34 = vector.extract_strided_slice %29 {offsets = [0, 0, 0], sizes = [2, 1, 32], strides = [1, 1, 1]} : vector<2x16x32xbf16> to vector<2x1x32xbf16>
    %35 = tpu.concatenate %33, %34 in 1 : vector<2x15x32xbf16>, vector<2x1x32xbf16> -> vector<2x16x32xbf16>
    %36 = vector.shape_cast %32 : vector<2x16x32xbf16> to vector<32x32xbf16>
    %37 = vector.extract_strided_slice %22 {offsets = [0, 0], sizes = [32, 32], strides = [1, 1]} : vector<96x32xbf16> to vector<32x32xbf16>
    %cst_23 = arith.constant dense<0.000000e+00> : vector<32x32xf32>
    %38 = tpu.matmul %36, %37, %cst_23 {dimension_numbers = #tpu.dot_dimension_numbers<[1], [0], [0], [1], [0, 0, 1, 1], [], []>} : vector<32x32xbf16>, vector<32x32xbf16>, vector<32x32xf32> -> vector<32x32xf32>
    %39 = vector.shape_cast %29 : vector<2x16x32xbf16> to vector<32x32xbf16>
    %40 = vector.extract_strided_slice %22 {offsets = [32, 0], sizes = [32, 32], strides = [1, 1]} : vector<96x32xbf16> to vector<32x32xbf16>
    %cst_24 = arith.constant dense<0.000000e+00> : vector<32x32xf32>
    %41 = tpu.matmul %39, %40, %cst_24 {dimension_numbers = #tpu.dot_dimension_numbers<[1], [0], [0], [1], [0, 0, 1, 1], [], []>} : vector<32x32xbf16>, vector<32x32xbf16>, vector<32x32xf32> -> vector<32x32xf32>
    %42 = arith.addf %38, %41 : vector<32x32xf32>
    %43 = vector.shape_cast %35 : vector<2x16x32xbf16> to vector<32x32xbf16>
    %44 = vector.extract_strided_slice %22 {offsets = [64, 0], sizes = [32, 32], strides = [1, 1]} : vector<96x32xbf16> to vector<32x32xbf16>
    %cst_25 = arith.constant dense<0.000000e+00> : vector<32x32xf32>
    %45 = tpu.matmul %43, %44, %cst_25 {dimension_numbers = #tpu.dot_dimension_numbers<[1], [0], [0], [1], [0, 0, 1, 1], [], []>} : vector<32x32xbf16>, vector<32x32xbf16>, vector<32x32xf32> -> vector<32x32xf32>
    %46 = arith.addf %42, %45 : vector<32x32xf32>
    %47 = vector.shape_cast %46 : vector<32x32xf32> to vector<2x16x32xf32>
    %48 = vector.shape_cast %24 : vector<1x32xf32> to vector<1x1x32xf32>
    %49 = vector.broadcast %48 : vector<1x1x32xf32> to vector<2x16x32xf32>
    %50 = arith.addf %47, %49 : vector<2x16x32xf32>
    %cst_26 = arith.constant 5.000000e-01 : f32
    %51 = vector.broadcast %cst_26 : f32 to vector<2x16x32xf32>
    %52 = arith.mulf %51, %50 : vector<2x16x32xf32>
    %cst_27 = arith.constant 4.471500e-02 : f32
    %53 = vector.broadcast %cst_27 : f32 to vector<2x16x32xf32>
    %54 = arith.mulf %53, %50 : vector<2x16x32xf32>
    %55 = arith.mulf %54, %50 : vector<2x16x32xf32>
    %56 = arith.mulf %55, %50 : vector<2x16x32xf32>
    %57 = arith.addf %50, %56 : vector<2x16x32xf32>
    %cst_28 = arith.constant 0.797884583 : f32
    %58 = vector.broadcast %cst_28 : f32 to vector<2x16x32xf32>
    %59 = arith.mulf %58, %57 : vector<2x16x32xf32>
    %60 = math.tanh %59 : vector<2x16x32xf32>
    %cst_29 = arith.constant 1.000000e+00 : f32
    %61 = vector.broadcast %cst_29 : f32 to vector<2x16x32xf32>
    %62 = arith.addf %61, %60 : vector<2x16x32xf32>
    %63 = arith.mulf %52, %62 : vector<2x16x32xf32>
    %64 = arith.truncf %63 : vector<2x16x32xf32> to vector<2x16x32xbf16>
    %65 = vector.extract_strided_slice %64 {offsets = [0, 15, 0], sizes = [2, 1, 32], strides = [1, 1, 1]} : vector<2x16x32xbf16> to vector<2x1x32xbf16>
    %66 = vector.extract_strided_slice %64 {offsets = [0, 0, 0], sizes = [2, 15, 32], strides = [1, 1, 1]} : vector<2x16x32xbf16> to vector<2x15x32xbf16>
    %67 = tpu.concatenate %65, %66 in 1 : vector<2x1x32xbf16>, vector<2x15x32xbf16> -> vector<2x16x32xbf16>
    %68 = vector.extract_strided_slice %64 {offsets = [0, 1, 0], sizes = [2, 15, 32], strides = [1, 1, 1]} : vector<2x16x32xbf16> to vector<2x15x32xbf16>
    %69 = vector.extract_strided_slice %64 {offsets = [0, 0, 0], sizes = [2, 1, 32], strides = [1, 1, 1]} : vector<2x16x32xbf16> to vector<2x1x32xbf16>
    %70 = tpu.concatenate %68, %69 in 1 : vector<2x15x32xbf16>, vector<2x1x32xbf16> -> vector<2x16x32xbf16>
    %71 = vector.shape_cast %67 : vector<2x16x32xbf16> to vector<32x32xbf16>
    %72 = vector.extract_strided_slice %26 {offsets = [0, 0], sizes = [32, 32], strides = [1, 1]} : vector<96x32xbf16> to vector<32x32xbf16>
    %cst_30 = arith.constant dense<0.000000e+00> : vector<32x32xf32>
    %73 = tpu.matmul %71, %72, %cst_30 {dimension_numbers = #tpu.dot_dimension_numbers<[1], [0], [0], [1], [0, 0, 1, 1], [], []>} : vector<32x32xbf16>, vector<32x32xbf16>, vector<32x32xf32> -> vector<32x32xf32>
    %74 = vector.shape_cast %64 : vector<2x16x32xbf16> to vector<32x32xbf16>
    %75 = vector.extract_strided_slice %26 {offsets = [32, 0], sizes = [32, 32], strides = [1, 1]} : vector<96x32xbf16> to vector<32x32xbf16>
    %cst_31 = arith.constant dense<0.000000e+00> : vector<32x32xf32>
    %76 = tpu.matmul %74, %75, %cst_31 {dimension_numbers = #tpu.dot_dimension_numbers<[1], [0], [0], [1], [0, 0, 1, 1], [], []>} : vector<32x32xbf16>, vector<32x32xbf16>, vector<32x32xf32> -> vector<32x32xf32>
    %77 = arith.addf %73, %76 : vector<32x32xf32>
    %78 = vector.shape_cast %70 : vector<2x16x32xbf16> to vector<32x32xbf16>
    %79 = vector.extract_strided_slice %26 {offsets = [64, 0], sizes = [32, 32], strides = [1, 1]} : vector<96x32xbf16> to vector<32x32xbf16>
    %cst_32 = arith.constant dense<0.000000e+00> : vector<32x32xf32>
    %80 = tpu.matmul %78, %79, %cst_32 {dimension_numbers = #tpu.dot_dimension_numbers<[1], [0], [0], [1], [0, 0, 1, 1], [], []>} : vector<32x32xbf16>, vector<32x32xbf16>, vector<32x32xf32> -> vector<32x32xf32>
    %81 = arith.addf %77, %80 : vector<32x32xf32>
    %82 = vector.shape_cast %81 : vector<32x32xf32> to vector<2x16x32xf32>
    %83 = vector.shape_cast %28 : vector<1x32xf32> to vector<1x1x32xf32>
    %84 = vector.broadcast %83 : vector<1x1x32xf32> to vector<2x16x32xf32>
    %85 = arith.addf %82, %84 : vector<2x16x32xf32>
    %86 = arith.addf %85, %20 : vector<2x16x32xf32>
    %cst_33 = arith.constant 5.000000e-01 : f32
    %87 = vector.broadcast %cst_33 : f32 to vector<2x16x32xf32>
    %88 = arith.mulf %87, %86 : vector<2x16x32xf32>
    %cst_34 = arith.constant 4.471500e-02 : f32
    %89 = vector.broadcast %cst_34 : f32 to vector<2x16x32xf32>
    %90 = arith.mulf %89, %86 : vector<2x16x32xf32>
    %91 = arith.mulf %90, %86 : vector<2x16x32xf32>
    %92 = arith.mulf %91, %86 : vector<2x16x32xf32>
    %93 = arith.addf %86, %92 : vector<2x16x32xf32>
    %cst_35 = arith.constant 0.797884583 : f32
    %94 = vector.broadcast %cst_35 : f32 to vector<2x16x32xf32>
    %95 = arith.mulf %94, %93 : vector<2x16x32xf32>
    %96 = math.tanh %95 : vector<2x16x32xf32>
    %cst_36 = arith.constant 1.000000e+00 : f32
    %97 = vector.broadcast %cst_36 : f32 to vector<2x16x32xf32>
    %98 = arith.addf %97, %96 : vector<2x16x32xf32>
    %99 = arith.mulf %88, %98 : vector<2x16x32xf32>
    %c1 = arith.constant 1 : index
    %c0_37 = arith.constant 0 : index
    %c0_38 = arith.constant 0 : index
    %100 = vector.load %arg4[%c1, %c0_37, %c0_38] : memref<4x96x32xbf16, #tpu.memory_space<vmem>>, vector<1x96x32xbf16>
    %101 = vector.shape_cast %100 : vector<1x96x32xbf16> to vector<96x32xbf16>
    %c1_39 = arith.constant 1 : index
    %c0_40 = arith.constant 0 : index
    %c0_41 = arith.constant 0 : index
    %102 = vector.load %arg5[%c1_39, %c0_40, %c0_41] : memref<4x1x32xf32, #tpu.memory_space<vmem>>, vector<1x1x32xf32>
    %103 = vector.shape_cast %102 : vector<1x1x32xf32> to vector<1x32xf32>
    %c1_42 = arith.constant 1 : index
    %c0_43 = arith.constant 0 : index
    %c0_44 = arith.constant 0 : index
    %104 = vector.load %arg6[%c1_42, %c0_43, %c0_44] : memref<4x96x32xbf16, #tpu.memory_space<vmem>>, vector<1x96x32xbf16>
    %105 = vector.shape_cast %104 : vector<1x96x32xbf16> to vector<96x32xbf16>
    %c1_45 = arith.constant 1 : index
    %c0_46 = arith.constant 0 : index
    %c0_47 = arith.constant 0 : index
    %106 = vector.load %arg7[%c1_45, %c0_46, %c0_47] : memref<4x1x32xf32, #tpu.memory_space<vmem>>, vector<1x1x32xf32>
    %107 = vector.shape_cast %106 : vector<1x1x32xf32> to vector<1x32xf32>
    %108 = arith.truncf %99 : vector<2x16x32xf32> to vector<2x16x32xbf16>
    %109 = vector.extract_strided_slice %108 {offsets = [0, 15, 0], sizes = [2, 1, 32], strides = [1, 1, 1]} : vector<2x16x32xbf16> to vector<2x1x32xbf16>
    %110 = vector.extract_strided_slice %108 {offsets = [0, 0, 0], sizes = [2, 15, 32], strides = [1, 1, 1]} : vector<2x16x32xbf16> to vector<2x15x32xbf16>
    %111 = tpu.concatenate %109, %110 in 1 : vector<2x1x32xbf16>, vector<2x15x32xbf16> -> vector<2x16x32xbf16>
    %112 = vector.extract_strided_slice %108 {offsets = [0, 1, 0], sizes = [2, 15, 32], strides = [1, 1, 1]} : vector<2x16x32xbf16> to vector<2x15x32xbf16>
    %113 = vector.extract_strided_slice %108 {offsets = [0, 0, 0], sizes = [2, 1, 32], strides = [1, 1, 1]} : vector<2x16x32xbf16> to vector<2x1x32xbf16>
    %114 = tpu.concatenate %112, %113 in 1 : vector<2x15x32xbf16>, vector<2x1x32xbf16> -> vector<2x16x32xbf16>
    %115 = vector.shape_cast %111 : vector<2x16x32xbf16> to vector<32x32xbf16>
    %116 = vector.extract_strided_slice %101 {offsets = [0, 0], sizes = [32, 32], strides = [1, 1]} : vector<96x32xbf16> to vector<32x32xbf16>
    %cst_48 = arith.constant dense<0.000000e+00> : vector<32x32xf32>
    %117 = tpu.matmul %115, %116, %cst_48 {dimension_numbers = #tpu.dot_dimension_numbers<[1], [0], [0], [1], [0, 0, 1, 1], [], []>} : vector<32x32xbf16>, vector<32x32xbf16>, vector<32x32xf32> -> vector<32x32xf32>
    %118 = vector.shape_cast %108 : vector<2x16x32xbf16> to vector<32x32xbf16>
    %119 = vector.extract_strided_slice %101 {offsets = [32, 0], sizes = [32, 32], strides = [1, 1]} : vector<96x32xbf16> to vector<32x32xbf16>
    %cst_49 = arith.constant dense<0.000000e+00> : vector<32x32xf32>
    %120 = tpu.matmul %118, %119, %cst_49 {dimension_numbers = #tpu.dot_dimension_numbers<[1], [0], [0], [1], [0, 0, 1, 1], [], []>} : vector<32x32xbf16>, vector<32x32xbf16>, vector<32x32xf32> -> vector<32x32xf32>
    %121 = arith.addf %117, %120 : vector<32x32xf32>
    %122 = vector.shape_cast %114 : vector<2x16x32xbf16> to vector<32x32xbf16>
    %123 = vector.extract_strided_slice %101 {offsets = [64, 0], sizes = [32, 32], strides = [1, 1]} : vector<96x32xbf16> to vector<32x32xbf16>
    %cst_50 = arith.constant dense<0.000000e+00> : vector<32x32xf32>
    %124 = tpu.matmul %122, %123, %cst_50 {dimension_numbers = #tpu.dot_dimension_numbers<[1], [0], [0], [1], [0, 0, 1, 1], [], []>} : vector<32x32xbf16>, vector<32x32xbf16>, vector<32x32xf32> -> vector<32x32xf32>
    %125 = arith.addf %121, %124 : vector<32x32xf32>
    %126 = vector.shape_cast %125 : vector<32x32xf32> to vector<2x16x32xf32>
    %127 = vector.shape_cast %103 : vector<1x32xf32> to vector<1x1x32xf32>
    %128 = vector.broadcast %127 : vector<1x1x32xf32> to vector<2x16x32xf32>
    %129 = arith.addf %126, %128 : vector<2x16x32xf32>
    %cst_51 = arith.constant 5.000000e-01 : f32
    %130 = vector.broadcast %cst_51 : f32 to vector<2x16x32xf32>
    %131 = arith.mulf %130, %129 : vector<2x16x32xf32>
    %cst_52 = arith.constant 4.471500e-02 : f32
    %132 = vector.broadcast %cst_52 : f32 to vector<2x16x32xf32>
    %133 = arith.mulf %132, %129 : vector<2x16x32xf32>
    %134 = arith.mulf %133, %129 : vector<2x16x32xf32>
    %135 = arith.mulf %134, %129 : vector<2x16x32xf32>
    %136 = arith.addf %129, %135 : vector<2x16x32xf32>
    %cst_53 = arith.constant 0.797884583 : f32
    %137 = vector.broadcast %cst_53 : f32 to vector<2x16x32xf32>
    %138 = arith.mulf %137, %136 : vector<2x16x32xf32>
    %139 = math.tanh %138 : vector<2x16x32xf32>
    %cst_54 = arith.constant 1.000000e+00 : f32
    %140 = vector.broadcast %cst_54 : f32 to vector<2x16x32xf32>
    %141 = arith.addf %140, %139 : vector<2x16x32xf32>
    %142 = arith.mulf %131, %141 : vector<2x16x32xf32>
    %143 = arith.truncf %142 : vector<2x16x32xf32> to vector<2x16x32xbf16>
    %144 = vector.extract_strided_slice %143 {offsets = [0, 15, 0], sizes = [2, 1, 32], strides = [1, 1, 1]} : vector<2x16x32xbf16> to vector<2x1x32xbf16>
    %145 = vector.extract_strided_slice %143 {offsets = [0, 0, 0], sizes = [2, 15, 32], strides = [1, 1, 1]} : vector<2x16x32xbf16> to vector<2x15x32xbf16>
    %146 = tpu.concatenate %144, %145 in 1 : vector<2x1x32xbf16>, vector<2x15x32xbf16> -> vector<2x16x32xbf16>
    %147 = vector.extract_strided_slice %143 {offsets = [0, 1, 0], sizes = [2, 15, 32], strides = [1, 1, 1]} : vector<2x16x32xbf16> to vector<2x15x32xbf16>
    %148 = vector.extract_strided_slice %143 {offsets = [0, 0, 0], sizes = [2, 1, 32], strides = [1, 1, 1]} : vector<2x16x32xbf16> to vector<2x1x32xbf16>
    %149 = tpu.concatenate %147, %148 in 1 : vector<2x15x32xbf16>, vector<2x1x32xbf16> -> vector<2x16x32xbf16>
    %150 = vector.shape_cast %146 : vector<2x16x32xbf16> to vector<32x32xbf16>
    %151 = vector.extract_strided_slice %105 {offsets = [0, 0], sizes = [32, 32], strides = [1, 1]} : vector<96x32xbf16> to vector<32x32xbf16>
    %cst_55 = arith.constant dense<0.000000e+00> : vector<32x32xf32>
    %152 = tpu.matmul %150, %151, %cst_55 {dimension_numbers = #tpu.dot_dimension_numbers<[1], [0], [0], [1], [0, 0, 1, 1], [], []>} : vector<32x32xbf16>, vector<32x32xbf16>, vector<32x32xf32> -> vector<32x32xf32>
    %153 = vector.shape_cast %143 : vector<2x16x32xbf16> to vector<32x32xbf16>
    %154 = vector.extract_strided_slice %105 {offsets = [32, 0], sizes = [32, 32], strides = [1, 1]} : vector<96x32xbf16> to vector<32x32xbf16>
    %cst_56 = arith.constant dense<0.000000e+00> : vector<32x32xf32>
    %155 = tpu.matmul %153, %154, %cst_56 {dimension_numbers = #tpu.dot_dimension_numbers<[1], [0], [0], [1], [0, 0, 1, 1], [], []>} : vector<32x32xbf16>, vector<32x32xbf16>, vector<32x32xf32> -> vector<32x32xf32>
    %156 = arith.addf %152, %155 : vector<32x32xf32>
    %157 = vector.shape_cast %149 : vector<2x16x32xbf16> to vector<32x32xbf16>
    %158 = vector.extract_strided_slice %105 {offsets = [64, 0], sizes = [32, 32], strides = [1, 1]} : vector<96x32xbf16> to vector<32x32xbf16>
    %cst_57 = arith.constant dense<0.000000e+00> : vector<32x32xf32>
    %159 = tpu.matmul %157, %158, %cst_57 {dimension_numbers = #tpu.dot_dimension_numbers<[1], [0], [0], [1], [0, 0, 1, 1], [], []>} : vector<32x32xbf16>, vector<32x32xbf16>, vector<32x32xf32> -> vector<32x32xf32>
    %160 = arith.addf %156, %159 : vector<32x32xf32>
    %161 = vector.shape_cast %160 : vector<32x32xf32> to vector<2x16x32xf32>
    %162 = vector.shape_cast %107 : vector<1x32xf32> to vector<1x1x32xf32>
    %163 = vector.broadcast %162 : vector<1x1x32xf32> to vector<2x16x32xf32>
    %164 = arith.addf %161, %163 : vector<2x16x32xf32>
    %165 = arith.addf %164, %99 : vector<2x16x32xf32>
    %cst_58 = arith.constant 5.000000e-01 : f32
    %166 = vector.broadcast %cst_58 : f32 to vector<2x16x32xf32>
    %167 = arith.mulf %166, %165 : vector<2x16x32xf32>
    %cst_59 = arith.constant 4.471500e-02 : f32
    %168 = vector.broadcast %cst_59 : f32 to vector<2x16x32xf32>
    %169 = arith.mulf %168, %165 : vector<2x16x32xf32>
    %170 = arith.mulf %169, %165 : vector<2x16x32xf32>
    %171 = arith.mulf %170, %165 : vector<2x16x32xf32>
    %172 = arith.addf %165, %171 : vector<2x16x32xf32>
    %cst_60 = arith.constant 0.797884583 : f32
    %173 = vector.broadcast %cst_60 : f32 to vector<2x16x32xf32>
    %174 = arith.mulf %173, %172 : vector<2x16x32xf32>
    %175 = math.tanh %174 : vector<2x16x32xf32>
    %cst_61 = arith.constant 1.000000e+00 : f32
    %176 = vector.broadcast %cst_61 : f32 to vector<2x16x32xf32>
    %177 = arith.addf %176, %175 : vector<2x16x32xf32>
    %178 = arith.mulf %167, %177 : vector<2x16x32xf32>
    %c2 = arith.constant 2 : index
    %c0_62 = arith.constant 0 : index
    %c0_63 = arith.constant 0 : index
    %179 = vector.load %arg4[%c2, %c0_62, %c0_63] : memref<4x96x32xbf16, #tpu.memory_space<vmem>>, vector<1x96x32xbf16>
    %180 = vector.shape_cast %179 : vector<1x96x32xbf16> to vector<96x32xbf16>
    %c2_64 = arith.constant 2 : index
    %c0_65 = arith.constant 0 : index
    %c0_66 = arith.constant 0 : index
    %181 = vector.load %arg5[%c2_64, %c0_65, %c0_66] : memref<4x1x32xf32, #tpu.memory_space<vmem>>, vector<1x1x32xf32>
    %182 = vector.shape_cast %181 : vector<1x1x32xf32> to vector<1x32xf32>
    %c2_67 = arith.constant 2 : index
    %c0_68 = arith.constant 0 : index
    %c0_69 = arith.constant 0 : index
    %183 = vector.load %arg6[%c2_67, %c0_68, %c0_69] : memref<4x96x32xbf16, #tpu.memory_space<vmem>>, vector<1x96x32xbf16>
    %184 = vector.shape_cast %183 : vector<1x96x32xbf16> to vector<96x32xbf16>
    %c2_70 = arith.constant 2 : index
    %c0_71 = arith.constant 0 : index
    %c0_72 = arith.constant 0 : index
    %185 = vector.load %arg7[%c2_70, %c0_71, %c0_72] : memref<4x1x32xf32, #tpu.memory_space<vmem>>, vector<1x1x32xf32>
    %186 = vector.shape_cast %185 : vector<1x1x32xf32> to vector<1x32xf32>
    %187 = arith.truncf %178 : vector<2x16x32xf32> to vector<2x16x32xbf16>
    %188 = vector.extract_strided_slice %187 {offsets = [0, 15, 0], sizes = [2, 1, 32], strides = [1, 1, 1]} : vector<2x16x32xbf16> to vector<2x1x32xbf16>
    %189 = vector.extract_strided_slice %187 {offsets = [0, 0, 0], sizes = [2, 15, 32], strides = [1, 1, 1]} : vector<2x16x32xbf16> to vector<2x15x32xbf16>
    %190 = tpu.concatenate %188, %189 in 1 : vector<2x1x32xbf16>, vector<2x15x32xbf16> -> vector<2x16x32xbf16>
    %191 = vector.extract_strided_slice %187 {offsets = [0, 1, 0], sizes = [2, 15, 32], strides = [1, 1, 1]} : vector<2x16x32xbf16> to vector<2x15x32xbf16>
    %192 = vector.extract_strided_slice %187 {offsets = [0, 0, 0], sizes = [2, 1, 32], strides = [1, 1, 1]} : vector<2x16x32xbf16> to vector<2x1x32xbf16>
    %193 = tpu.concatenate %191, %192 in 1 : vector<2x15x32xbf16>, vector<2x1x32xbf16> -> vector<2x16x32xbf16>
    %194 = vector.shape_cast %190 : vector<2x16x32xbf16> to vector<32x32xbf16>
    %195 = vector.extract_strided_slice %180 {offsets = [0, 0], sizes = [32, 32], strides = [1, 1]} : vector<96x32xbf16> to vector<32x32xbf16>
    %cst_73 = arith.constant dense<0.000000e+00> : vector<32x32xf32>
    %196 = tpu.matmul %194, %195, %cst_73 {dimension_numbers = #tpu.dot_dimension_numbers<[1], [0], [0], [1], [0, 0, 1, 1], [], []>} : vector<32x32xbf16>, vector<32x32xbf16>, vector<32x32xf32> -> vector<32x32xf32>
    %197 = vector.shape_cast %187 : vector<2x16x32xbf16> to vector<32x32xbf16>
    %198 = vector.extract_strided_slice %180 {offsets = [32, 0], sizes = [32, 32], strides = [1, 1]} : vector<96x32xbf16> to vector<32x32xbf16>
    %cst_74 = arith.constant dense<0.000000e+00> : vector<32x32xf32>
    %199 = tpu.matmul %197, %198, %cst_74 {dimension_numbers = #tpu.dot_dimension_numbers<[1], [0], [0], [1], [0, 0, 1, 1], [], []>} : vector<32x32xbf16>, vector<32x32xbf16>, vector<32x32xf32> -> vector<32x32xf32>
    %200 = arith.addf %196, %199 : vector<32x32xf32>
    %201 = vector.shape_cast %193 : vector<2x16x32xbf16> to vector<32x32xbf16>
    %202 = vector.extract_strided_slice %180 {offsets = [64, 0], sizes = [32, 32], strides = [1, 1]} : vector<96x32xbf16> to vector<32x32xbf16>
    %cst_75 = arith.constant dense<0.000000e+00> : vector<32x32xf32>
    %203 = tpu.matmul %201, %202, %cst_75 {dimension_numbers = #tpu.dot_dimension_numbers<[1], [0], [0], [1], [0, 0, 1, 1], [], []>} : vector<32x32xbf16>, vector<32x32xbf16>, vector<32x32xf32> -> vector<32x32xf32>
    %204 = arith.addf %200, %203 : vector<32x32xf32>
    %205 = vector.shape_cast %204 : vector<32x32xf32> to vector<2x16x32xf32>
    %206 = vector.shape_cast %182 : vector<1x32xf32> to vector<1x1x32xf32>
    %207 = vector.broadcast %206 : vector<1x1x32xf32> to vector<2x16x32xf32>
    %208 = arith.addf %205, %207 : vector<2x16x32xf32>
    %cst_76 = arith.constant 5.000000e-01 : f32
    %209 = vector.broadcast %cst_76 : f32 to vector<2x16x32xf32>
    %210 = arith.mulf %209, %208 : vector<2x16x32xf32>
    %cst_77 = arith.constant 4.471500e-02 : f32
    %211 = vector.broadcast %cst_77 : f32 to vector<2x16x32xf32>
    %212 = arith.mulf %211, %208 : vector<2x16x32xf32>
    %213 = arith.mulf %212, %208 : vector<2x16x32xf32>
    %214 = arith.mulf %213, %208 : vector<2x16x32xf32>
    %215 = arith.addf %208, %214 : vector<2x16x32xf32>
    %cst_78 = arith.constant 0.797884583 : f32
    %216 = vector.broadcast %cst_78 : f32 to vector<2x16x32xf32>
    %217 = arith.mulf %216, %215 : vector<2x16x32xf32>
    %218 = math.tanh %217 : vector<2x16x32xf32>
    %cst_79 = arith.constant 1.000000e+00 : f32
    %219 = vector.broadcast %cst_79 : f32 to vector<2x16x32xf32>
    %220 = arith.addf %219, %218 : vector<2x16x32xf32>
    %221 = arith.mulf %210, %220 : vector<2x16x32xf32>
    %222 = arith.truncf %221 : vector<2x16x32xf32> to vector<2x16x32xbf16>
    %223 = vector.extract_strided_slice %222 {offsets = [0, 15, 0], sizes = [2, 1, 32], strides = [1, 1, 1]} : vector<2x16x32xbf16> to vector<2x1x32xbf16>
    %224 = vector.extract_strided_slice %222 {offsets = [0, 0, 0], sizes = [2, 15, 32], strides = [1, 1, 1]} : vector<2x16x32xbf16> to vector<2x15x32xbf16>
    %225 = tpu.concatenate %223, %224 in 1 : vector<2x1x32xbf16>, vector<2x15x32xbf16> -> vector<2x16x32xbf16>
    %226 = vector.extract_strided_slice %222 {offsets = [0, 1, 0], sizes = [2, 15, 32], strides = [1, 1, 1]} : vector<2x16x32xbf16> to vector<2x15x32xbf16>
    %227 = vector.extract_strided_slice %222 {offsets = [0, 0, 0], sizes = [2, 1, 32], strides = [1, 1, 1]} : vector<2x16x32xbf16> to vector<2x1x32xbf16>
    %228 = tpu.concatenate %226, %227 in 1 : vector<2x15x32xbf16>, vector<2x1x32xbf16> -> vector<2x16x32xbf16>
    %229 = vector.shape_cast %225 : vector<2x16x32xbf16> to vector<32x32xbf16>
    %230 = vector.extract_strided_slice %184 {offsets = [0, 0], sizes = [32, 32], strides = [1, 1]} : vector<96x32xbf16> to vector<32x32xbf16>
    %cst_80 = arith.constant dense<0.000000e+00> : vector<32x32xf32>
    %231 = tpu.matmul %229, %230, %cst_80 {dimension_numbers = #tpu.dot_dimension_numbers<[1], [0], [0], [1], [0, 0, 1, 1], [], []>} : vector<32x32xbf16>, vector<32x32xbf16>, vector<32x32xf32> -> vector<32x32xf32>
    %232 = vector.shape_cast %222 : vector<2x16x32xbf16> to vector<32x32xbf16>
    %233 = vector.extract_strided_slice %184 {offsets = [32, 0], sizes = [32, 32], strides = [1, 1]} : vector<96x32xbf16> to vector<32x32xbf16>
    %cst_81 = arith.constant dense<0.000000e+00> : vector<32x32xf32>
    %234 = tpu.matmul %232, %233, %cst_81 {dimension_numbers = #tpu.dot_dimension_numbers<[1], [0], [0], [1], [0, 0, 1, 1], [], []>} : vector<32x32xbf16>, vector<32x32xbf16>, vector<32x32xf32> -> vector<32x32xf32>
    %235 = arith.addf %231, %234 : vector<32x32xf32>
    %236 = vector.shape_cast %228 : vector<2x16x32xbf16> to vector<32x32xbf16>
    %237 = vector.extract_strided_slice %184 {offsets = [64, 0], sizes = [32, 32], strides = [1, 1]} : vector<96x32xbf16> to vector<32x32xbf16>
    %cst_82 = arith.constant dense<0.000000e+00> : vector<32x32xf32>
    %238 = tpu.matmul %236, %237, %cst_82 {dimension_numbers = #tpu.dot_dimension_numbers<[1], [0], [0], [1], [0, 0, 1, 1], [], []>} : vector<32x32xbf16>, vector<32x32xbf16>, vector<32x32xf32> -> vector<32x32xf32>
    %239 = arith.addf %235, %238 : vector<32x32xf32>
    %240 = vector.shape_cast %239 : vector<32x32xf32> to vector<2x16x32xf32>
    %241 = vector.shape_cast %186 : vector<1x32xf32> to vector<1x1x32xf32>
    %242 = vector.broadcast %241 : vector<1x1x32xf32> to vector<2x16x32xf32>
    %243 = arith.addf %240, %242 : vector<2x16x32xf32>
    %244 = arith.addf %243, %178 : vector<2x16x32xf32>
    %cst_83 = arith.constant 5.000000e-01 : f32
    %245 = vector.broadcast %cst_83 : f32 to vector<2x16x32xf32>
    %246 = arith.mulf %245, %244 : vector<2x16x32xf32>
    %cst_84 = arith.constant 4.471500e-02 : f32
    %247 = vector.broadcast %cst_84 : f32 to vector<2x16x32xf32>
    %248 = arith.mulf %247, %244 : vector<2x16x32xf32>
    %249 = arith.mulf %248, %244 : vector<2x16x32xf32>
    %250 = arith.mulf %249, %244 : vector<2x16x32xf32>
    %251 = arith.addf %244, %250 : vector<2x16x32xf32>
    %cst_85 = arith.constant 0.797884583 : f32
    %252 = vector.broadcast %cst_85 : f32 to vector<2x16x32xf32>
    %253 = arith.mulf %252, %251 : vector<2x16x32xf32>
    %254 = math.tanh %253 : vector<2x16x32xf32>
    %cst_86 = arith.constant 1.000000e+00 : f32
    %255 = vector.broadcast %cst_86 : f32 to vector<2x16x32xf32>
    %256 = arith.addf %255, %254 : vector<2x16x32xf32>
    %257 = arith.mulf %246, %256 : vector<2x16x32xf32>
    %c3 = arith.constant 3 : index
    %c0_87 = arith.constant 0 : index
    %c0_88 = arith.constant 0 : index
    %258 = vector.load %arg4[%c3, %c0_87, %c0_88] : memref<4x96x32xbf16, #tpu.memory_space<vmem>>, vector<1x96x32xbf16>
    %259 = vector.shape_cast %258 : vector<1x96x32xbf16> to vector<96x32xbf16>
    %c3_89 = arith.constant 3 : index
    %c0_90 = arith.constant 0 : index
    %c0_91 = arith.constant 0 : index
    %260 = vector.load %arg5[%c3_89, %c0_90, %c0_91] : memref<4x1x32xf32, #tpu.memory_space<vmem>>, vector<1x1x32xf32>
    %261 = vector.shape_cast %260 : vector<1x1x32xf32> to vector<1x32xf32>
    %c3_92 = arith.constant 3 : index
    %c0_93 = arith.constant 0 : index
    %c0_94 = arith.constant 0 : index
    %262 = vector.load %arg6[%c3_92, %c0_93, %c0_94] : memref<4x96x32xbf16, #tpu.memory_space<vmem>>, vector<1x96x32xbf16>
    %263 = vector.shape_cast %262 : vector<1x96x32xbf16> to vector<96x32xbf16>
    %c3_95 = arith.constant 3 : index
    %c0_96 = arith.constant 0 : index
    %c0_97 = arith.constant 0 : index
    %264 = vector.load %arg7[%c3_95, %c0_96, %c0_97] : memref<4x1x32xf32, #tpu.memory_space<vmem>>, vector<1x1x32xf32>
    %265 = vector.shape_cast %264 : vector<1x1x32xf32> to vector<1x32xf32>
    %266 = arith.truncf %257 : vector<2x16x32xf32> to vector<2x16x32xbf16>
    %267 = vector.extract_strided_slice %266 {offsets = [0, 15, 0], sizes = [2, 1, 32], strides = [1, 1, 1]} : vector<2x16x32xbf16> to vector<2x1x32xbf16>
    %268 = vector.extract_strided_slice %266 {offsets = [0, 0, 0], sizes = [2, 15, 32], strides = [1, 1, 1]} : vector<2x16x32xbf16> to vector<2x15x32xbf16>
    %269 = tpu.concatenate %267, %268 in 1 : vector<2x1x32xbf16>, vector<2x15x32xbf16> -> vector<2x16x32xbf16>
    %270 = vector.extract_strided_slice %266 {offsets = [0, 1, 0], sizes = [2, 15, 32], strides = [1, 1, 1]} : vector<2x16x32xbf16> to vector<2x15x32xbf16>
    %271 = vector.extract_strided_slice %266 {offsets = [0, 0, 0], sizes = [2, 1, 32], strides = [1, 1, 1]} : vector<2x16x32xbf16> to vector<2x1x32xbf16>
    %272 = tpu.concatenate %270, %271 in 1 : vector<2x15x32xbf16>, vector<2x1x32xbf16> -> vector<2x16x32xbf16>
    %273 = vector.shape_cast %269 : vector<2x16x32xbf16> to vector<32x32xbf16>
    %274 = vector.extract_strided_slice %259 {offsets = [0, 0], sizes = [32, 32], strides = [1, 1]} : vector<96x32xbf16> to vector<32x32xbf16>
    %cst_98 = arith.constant dense<0.000000e+00> : vector<32x32xf32>
    %275 = tpu.matmul %273, %274, %cst_98 {dimension_numbers = #tpu.dot_dimension_numbers<[1], [0], [0], [1], [0, 0, 1, 1], [], []>} : vector<32x32xbf16>, vector<32x32xbf16>, vector<32x32xf32> -> vector<32x32xf32>
    %276 = vector.shape_cast %266 : vector<2x16x32xbf16> to vector<32x32xbf16>
    %277 = vector.extract_strided_slice %259 {offsets = [32, 0], sizes = [32, 32], strides = [1, 1]} : vector<96x32xbf16> to vector<32x32xbf16>
    %cst_99 = arith.constant dense<0.000000e+00> : vector<32x32xf32>
    %278 = tpu.matmul %276, %277, %cst_99 {dimension_numbers = #tpu.dot_dimension_numbers<[1], [0], [0], [1], [0, 0, 1, 1], [], []>} : vector<32x32xbf16>, vector<32x32xbf16>, vector<32x32xf32> -> vector<32x32xf32>
    %279 = arith.addf %275, %278 : vector<32x32xf32>
    %280 = vector.shape_cast %272 : vector<2x16x32xbf16> to vector<32x32xbf16>
    %281 = vector.extract_strided_slice %259 {offsets = [64, 0], sizes = [32, 32], strides = [1, 1]} : vector<96x32xbf16> to vector<32x32xbf16>
    %cst_100 = arith.constant dense<0.000000e+00> : vector<32x32xf32>
    %282 = tpu.matmul %280, %281, %cst_100 {dimension_numbers = #tpu.dot_dimension_numbers<[1], [0], [0], [1], [0, 0, 1, 1], [], []>} : vector<32x32xbf16>, vector<32x32xbf16>, vector<32x32xf32> -> vector<32x32xf32>
    %283 = arith.addf %279, %282 : vector<32x32xf32>
    %284 = vector.shape_cast %283 : vector<32x32xf32> to vector<2x16x32xf32>
    %285 = vector.shape_cast %261 : vector<1x32xf32> to vector<1x1x32xf32>
    %286 = vector.broadcast %285 : vector<1x1x32xf32> to vector<2x16x32xf32>
    %287 = arith.addf %284, %286 : vector<2x16x32xf32>
    %cst_101 = arith.constant 5.000000e-01 : f32
    %288 = vector.broadcast %cst_101 : f32 to vector<2x16x32xf32>
    %289 = arith.mulf %288, %287 : vector<2x16x32xf32>
    %cst_102 = arith.constant 4.471500e-02 : f32
    %290 = vector.broadcast %cst_102 : f32 to vector<2x16x32xf32>
    %291 = arith.mulf %290, %287 : vector<2x16x32xf32>
    %292 = arith.mulf %291, %287 : vector<2x16x32xf32>
    %293 = arith.mulf %292, %287 : vector<2x16x32xf32>
    %294 = arith.addf %287, %293 : vector<2x16x32xf32>
    %cst_103 = arith.constant 0.797884583 : f32
    %295 = vector.broadcast %cst_103 : f32 to vector<2x16x32xf32>
    %296 = arith.mulf %295, %294 : vector<2x16x32xf32>
    %297 = math.tanh %296 : vector<2x16x32xf32>
    %cst_104 = arith.constant 1.000000e+00 : f32
    %298 = vector.broadcast %cst_104 : f32 to vector<2x16x32xf32>
    %299 = arith.addf %298, %297 : vector<2x16x32xf32>
    %300 = arith.mulf %289, %299 : vector<2x16x32xf32>
    %301 = arith.truncf %300 : vector<2x16x32xf32> to vector<2x16x32xbf16>
    %302 = vector.extract_strided_slice %301 {offsets = [0, 15, 0], sizes = [2, 1, 32], strides = [1, 1, 1]} : vector<2x16x32xbf16> to vector<2x1x32xbf16>
    %303 = vector.extract_strided_slice %301 {offsets = [0, 0, 0], sizes = [2, 15, 32], strides = [1, 1, 1]} : vector<2x16x32xbf16> to vector<2x15x32xbf16>
    %304 = tpu.concatenate %302, %303 in 1 : vector<2x1x32xbf16>, vector<2x15x32xbf16> -> vector<2x16x32xbf16>
    %305 = vector.extract_strided_slice %301 {offsets = [0, 1, 0], sizes = [2, 15, 32], strides = [1, 1, 1]} : vector<2x16x32xbf16> to vector<2x15x32xbf16>
    %306 = vector.extract_strided_slice %301 {offsets = [0, 0, 0], sizes = [2, 1, 32], strides = [1, 1, 1]} : vector<2x16x32xbf16> to vector<2x1x32xbf16>
    %307 = tpu.concatenate %305, %306 in 1 : vector<2x15x32xbf16>, vector<2x1x32xbf16> -> vector<2x16x32xbf16>
    %308 = vector.shape_cast %304 : vector<2x16x32xbf16> to vector<32x32xbf16>
    %309 = vector.extract_strided_slice %263 {offsets = [0, 0], sizes = [32, 32], strides = [1, 1]} : vector<96x32xbf16> to vector<32x32xbf16>
    %cst_105 = arith.constant dense<0.000000e+00> : vector<32x32xf32>
    %310 = tpu.matmul %308, %309, %cst_105 {dimension_numbers = #tpu.dot_dimension_numbers<[1], [0], [0], [1], [0, 0, 1, 1], [], []>} : vector<32x32xbf16>, vector<32x32xbf16>, vector<32x32xf32> -> vector<32x32xf32>
    %311 = vector.shape_cast %301 : vector<2x16x32xbf16> to vector<32x32xbf16>
    %312 = vector.extract_strided_slice %263 {offsets = [32, 0], sizes = [32, 32], strides = [1, 1]} : vector<96x32xbf16> to vector<32x32xbf16>
    %cst_106 = arith.constant dense<0.000000e+00> : vector<32x32xf32>
    %313 = tpu.matmul %311, %312, %cst_106 {dimension_numbers = #tpu.dot_dimension_numbers<[1], [0], [0], [1], [0, 0, 1, 1], [], []>} : vector<32x32xbf16>, vector<32x32xbf16>, vector<32x32xf32> -> vector<32x32xf32>
    %314 = arith.addf %310, %313 : vector<32x32xf32>
    %315 = vector.shape_cast %307 : vector<2x16x32xbf16> to vector<32x32xbf16>
    %316 = vector.extract_strided_slice %263 {offsets = [64, 0], sizes = [32, 32], strides = [1, 1]} : vector<96x32xbf16> to vector<32x32xbf16>
    %cst_107 = arith.constant dense<0.000000e+00> : vector<32x32xf32>
    %317 = tpu.matmul %315, %316, %cst_107 {dimension_numbers = #tpu.dot_dimension_numbers<[1], [0], [0], [1], [0, 0, 1, 1], [], []>} : vector<32x32xbf16>, vector<32x32xbf16>, vector<32x32xf32> -> vector<32x32xf32>
    %318 = arith.addf %314, %317 : vector<32x32xf32>
    %319 = vector.shape_cast %318 : vector<32x32xf32> to vector<2x16x32xf32>
    %320 = vector.shape_cast %265 : vector<1x32xf32> to vector<1x1x32xf32>
    %321 = vector.broadcast %320 : vector<1x1x32xf32> to vector<2x16x32xf32>
    %322 = arith.addf %319, %321 : vector<2x16x32xf32>
    %323 = arith.addf %322, %257 : vector<2x16x32xf32>
    %cst_108 = arith.constant 5.000000e-01 : f32
    %324 = vector.broadcast %cst_108 : f32 to vector<2x16x32xf32>
    %325 = arith.mulf %324, %323 : vector<2x16x32xf32>
    %cst_109 = arith.constant 4.471500e-02 : f32
    %326 = vector.broadcast %cst_109 : f32 to vector<2x16x32xf32>
    %327 = arith.mulf %326, %323 : vector<2x16x32xf32>
    %328 = arith.mulf %327, %323 : vector<2x16x32xf32>
    %329 = arith.mulf %328, %323 : vector<2x16x32xf32>
    %330 = arith.addf %323, %329 : vector<2x16x32xf32>
    %cst_110 = arith.constant 0.797884583 : f32
    %331 = vector.broadcast %cst_110 : f32 to vector<2x16x32xf32>
    %332 = arith.mulf %331, %330 : vector<2x16x32xf32>
    %333 = math.tanh %332 : vector<2x16x32xf32>
    %cst_111 = arith.constant 1.000000e+00 : f32
    %334 = vector.broadcast %cst_111 : f32 to vector<2x16x32xf32>
    %335 = arith.addf %334, %333 : vector<2x16x32xf32>
    %336 = arith.mulf %325, %335 : vector<2x16x32xf32>
    %337 = vector.shape_cast %336 : vector<2x16x32xf32> to vector<32x32xf32>
    %338 = arith.truncf %337 : vector<32x32xf32> to vector<32x32xbf16>
    %c0_112 = arith.constant 0 : index
    %c0_113 = arith.constant 0 : index
    %339 = vector.load %arg8[%c0_112, %c0_113] : memref<32x4xbf16, #tpu.memory_space<vmem>>, vector<32x4xbf16>
    %cst_114 = arith.constant dense<0.000000e+00> : vector<32x4xf32>
    %340 = tpu.matmul %338, %339, %cst_114 {dimension_numbers = #tpu.dot_dimension_numbers<[1], [0], [0], [1], [0, 0, 1, 1], [], []>} : vector<32x32xbf16>, vector<32x4xbf16>, vector<32x4xf32> -> vector<32x4xf32>
    %c0_115 = arith.constant 0 : index
    %c0_116 = arith.constant 0 : index
    %341 = vector.load %arg9[%c0_115, %c0_116] : memref<1x4xf32, #tpu.memory_space<vmem>>, vector<1x4xf32>
    %342 = vector.broadcast %341 : vector<1x4xf32> to vector<32x4xf32>
    %343 = arith.addf %340, %342 : vector<32x4xf32>
    %344 = vector.shape_cast %343 : vector<32x4xf32> to vector<2x16x4xf32>
    %c0_117 = arith.constant 0 : index
    %c0_118 = arith.constant 0 : index
    %c0_119 = arith.constant 0 : index
    %345 = vector.load %arg10[%c0_117, %c0_118, %c0_119] : memref<2x16x4xf32, #tpu.memory_space<vmem>>, vector<2x16x4xf32>
    tpu.vector_store %arg10[%c0_117, %c0_118, %c0_119], %344 {strides = array<i32>} : memref<2x16x4xf32, #tpu.memory_space<vmem>>, vector<2x16x4xf32>,
    return
  }
  func.func @transform_0(%arg0: i32) -> (i32, i32, i32) {
    %c0_i32 = arith.constant 0 : i32
    %c0_i32_0 = arith.constant 0 : i32
    %c0_i32_1 = arith.constant 0 : i32
    return %arg0, %c0_i32, %c0_i32_0 : i32, i32, i32
  }
  func.func @transform_1(%arg0: i32) -> (i32, i32) {
    %c0_i32 = arith.constant 0 : i32
    %c0_i32_0 = arith.constant 0 : i32
    %c0_i32_1 = arith.constant 0 : i32
    return %c0_i32, %c0_i32_0 : i32, i32
  }
  func.func @transform_2(%arg0: i32) -> (i32, i32, i32) {
    %c0_i32 = arith.constant 0 : i32
    %c0_i32_0 = arith.constant 0 : i32
    %c0_i32_1 = arith.constant 0 : i32
    return %arg0, %c0_i32, %c0_i32_0 : i32, i32, i32
  }
  func.func @transform_3(%arg0: i32) -> (i32, i32, i32) {
    %c0_i32 = arith.constant 0 : i32
    %c0_i32_0 = arith.constant 0 : i32
    %c0_i32_1 = arith.constant 0 : i32
    %c0_i32_2 = arith.constant 0 : i32
    return %c0_i32, %c0_i32_0, %c0_i32_1 : i32, i32, i32
  }
  func.func @transform_4(%arg0: i32) -> (i32, i32, i32) {
    %c0_i32 = arith.constant 0 : i32
    %c0_i32_0 = arith.constant 0 : i32
    %c0_i32_1 = arith.constant 0 : i32
    %c0_i32_2 = arith.constant 0 : i32
    return %c0_i32, %c0_i32_0, %c0_i32_1 : i32, i32, i32
  }
  func.func @transform_5(%arg0: i32) -> (i32, i32, i32) {
    %c0_i32 = arith.constant 0 : i32
    %c0_i32_0 = arith.constant 0 : i32
    %c0_i32_1 = arith.constant 0 : i32
    %c0_i32_2 = arith.constant 0 : i32
    return %c0_i32, %c0_i32_0, %c0_i32_1 : i32, i32, i32
  }
  func.func @transform_6(%arg0: i32) -> (i32, i32, i32) {
    %c0_i32 = arith.constant 0 : i32
    %c0_i32_0 = arith.constant 0 : i32
    %c0_i32_1 = arith.constant 0 : i32
    %c0_i32_2 = arith.constant 0 : i32
    return %c0_i32, %c0_i32_0, %c0_i32_1 : i32, i32, i32
  }
  func.func @transform_7(%arg0: i32) -> (i32, i32) {
    %c0_i32 = arith.constant 0 : i32
    %c0_i32_0 = arith.constant 0 : i32
    %c0_i32_1 = arith.constant 0 : i32
    return %c0_i32, %c0_i32_0 : i32, i32
  }
  func.func @transform_8(%arg0: i32) -> (i32, i32) {
    %c0_i32 = arith.constant 0 : i32
    %c0_i32_0 = arith.constant 0 : i32
    %c0_i32_1 = arith.constant 0 : i32
    return %c0_i32, %c0_i32_0 : i32, i32
  }
  func.func @transform_9(%arg0: i32) -> (i32, i32, i32) {
    %c0_i32 = arith.constant 0 : i32
    %c0_i32_0 = arith.constant 0 : i32
    %c0_i32_1 = arith.constant 0 : i32
    return %arg0, %c0_i32, %c0_i32_0 : i32, i32, i32
  }
}

</mosaic_0001>

<llo_original>
// kernel: tpu_custom_call.1
$region0: #{tpu_custom_call.1}
  #allocation0 [shape = 'u32[]', space=smem, size = 0x4, offset = 0x4, fixed_abs, tag = 'smem constant byte address 0x4 - core index']
  #allocation1 [shape = 'u32[72,128]{1,0:T(1,128)}', space=vmem, size = 0x9000, scoped, tag = 'internal scratch']
  %s0 = inlined_call_operand.vmem [shape: bf16[2,16,8], index: 0, kind: input, shape index: {}]
  %s1 = inlined_call_operand.vmem [shape: bf16[8,32], index: 1, kind: input, shape index: {}]
  %s2 = inlined_call_operand.vmem [shape: f32[2,1,32], index: 2, kind: input, shape index: {}]
  %s3 = inlined_call_operand.vmem [shape: bf16[4,96,32], index: 3, kind: input, shape index: {}]
  %s4 = inlined_call_operand.vmem [shape: f32[4,1,32], index: 4, kind: input, shape index: {}]
  %s5 = inlined_call_operand.vmem [shape: bf16[4,96,32], index: 5, kind: input, shape index: {}]
  %s6 = inlined_call_operand.vmem [shape: f32[4,1,32], index: 6, kind: input, shape index: {}]
  %s7 = inlined_call_operand.vmem [shape: bf16[32,4], index: 7, kind: input, shape index: {}]
  %s8 = inlined_call_operand.vmem [shape: f32[1,4], index: 8, kind: input, shape index: {}]
  %s9 = inlined_call_operand.vmem [shape: f32[2,16,4], index: 9, kind: output, shape index: {}]
  %s10 = sld [smem:[#allocation0]]
  $region46: #{tpu_custom_call.1} parent=0
    _
  %s12 = ssub.s32 1, %s10
  %s13 = scalar_select 0, %s12, %s10
  // Predicated region
  $region2: #{tpu_custom_call.1} parent=0 // pred_check
    _
  $region3: #{tpu_custom_call.1} parent=0 // pred_check_branch
    %15 = sbr.rel (0) target = $region5
  $region4: #{tpu_custom_call.1} parent=0 // pred_region
    _
  $region5: #{tpu_custom_call.1} parent=0 // pred_fallthru
    _
  // Predicated region
  $region6: #{tpu_custom_call.1} parent=0 // pred_check
    _
  $region7: #{tpu_custom_call.1} parent=0 // pred_check_branch
    %17 = sbr.rel (0) target = $region9
  $region8: #{tpu_custom_call.1} parent=0 // pred_region
    _
  $region9: #{tpu_custom_call.1} parent=0 // pred_fallthru
    _
  // Predicated region
  $region10: #{tpu_custom_call.1} parent=0 // pred_check
    _
  $region11: #{tpu_custom_call.1} parent=0 // pred_check_branch
    %19 = sbr.rel (0) target = $region13
  $region12: #{tpu_custom_call.1} parent=0 // pred_region
    _
  $region13: #{tpu_custom_call.1} parent=0 // pred_fallthru
    _
  // Predicated region
  $region14: #{tpu_custom_call.1} parent=0 // pred_check
    _
  $region15: #{tpu_custom_call.1} parent=0 // pred_check_branch
    %21 = sbr.rel (0) target = $region17
  $region16: #{tpu_custom_call.1} parent=0 // pred_region
    _
  $region17: #{tpu_custom_call.1} parent=0 // pred_fallthru
    _
  // Predicated region
  $region18: #{tpu_custom_call.1} parent=0 // pred_check
    _
  $region19: #{tpu_custom_call.1} parent=0 // pred_check_branch
    %23 = sbr.rel (0) target = $region21
  $region20: #{tpu_custom_call.1} parent=0 // pred_region
    _
  $region21: #{tpu_custom_call.1} parent=0 // pred_fallthru
    _
  // Predicated region
  $region22: #{tpu_custom_call.1} parent=0 // pred_check
    _
  $region23: #{tpu_custom_call.1} parent=0 // pred_check_branch
    %25 = sbr.rel (0) target = $region25
  $region24: #{tpu_custom_call.1} parent=0 // pred_region
    _
  $region25: #{tpu_custom_call.1} parent=0 // pred_fallthru
    _
  // Predicated region
  $region26: #{tpu_custom_call.1} parent=0 // pred_check
    _
  $region27: #{tpu_custom_call.1} parent=0 // pred_check_branch
    %27 = sbr.rel (0) target = $region29
  $region28: #{tpu_custom_call.1} parent=0 // pred_region
    _
  $region29: #{tpu_custom_call.1} parent=0 // pred_fallthru
    _
  // Predicated region
  $region30: #{tpu_custom_call.1} parent=0 // pred_check
    _
  $region31: #{tpu_custom_call.1} parent=0 // pred_check_branch
    %29 = sbr.rel (0) target = $region33
  $region32: #{tpu_custom_call.1} parent=0 // pred_region
    _
  $region33: #{tpu_custom_call.1} parent=0 // pred_fallthru
    _
  // Predicated region
  $region34: #{tpu_custom_call.1} parent=0 // pred_check
    _
  $region35: #{tpu_custom_call.1} parent=0 // pred_check_branch
    %31 = sbr.rel (0) target = $region37
  $region36: #{tpu_custom_call.1} parent=0 // pred_region
    _
  $region37: #{tpu_custom_call.1} parent=0 // pred_fallthru
    _
  %v33 = vld [vmem:[%s0] sm:$0xf]
  %v34 = vld [vmem:[%s0 + $0x4] sm:$0xf]
  %v35 = vld [vmem:[%s0 + $0x8] sm:$0xf]
  %v36 = vld [vmem:[%s0 + $0xc] sm:$0xf]
  %v37 = vld [vmem:[%s1] sm:$0xf]
  %v42 = vunpack.c.l.b16 %v33
  %v43 = vunpack.c.l.b16 %v34
  %v44 = vunpack.c.l.b16 %v35
  %v45 = vunpack.c.l.b16 %v36
  %v46 = vpack.c.b16 %v43, %v42
  %v47 = vpack.c.b16 %v45, %v44
  %vm48 = vcmask 64512
  %v50 = vsel %vm48, %v46, 0
  %v53 = vsel %vm48, %v47, 0
  %vm55 = vcmask 1043456
  %v57 = vsel %vm55, %v37, 0
  %59 = vmatpush.bf16.msra.mxu0 0
  %60 = vmatpush.bf16.msra.mxu0 0
  %61 = vmatpush.bf16.msra.mxu0 0
  %62 = vmatpush.bf16.msra.mxu0 0
  %63 = vmatpush.bf16.msra.mxu0 0
  %64 = vmatpush.bf16.msra.mxu0 0
  %65 = vmatpush.bf16.msra.mxu0 0
  %66 = vmatpush.bf16.msra.mxu0 %v57
  %67 = vmatmul.bf16.gmra.mxu0 %v50
  %v68 = vpop.f32.mrf.mxu0
  %v69 = vadd.f32 0.0, %v68
  %v70 = vpop.f32.mrf.mxu0
  %v71 = vadd.f32 0.0, %v70
  %72 = vmatmul.bf16.gmra.mxu0 %v53
  %v73 = vpop.f32.mrf.mxu0
  %v74 = vadd.f32 0.0, %v73
  %v75 = vpop.f32.mrf.mxu0
  %v76 = vadd.f32 0.0, %v75
  %77 = vdwg.mxu0
  %v78 = vld [vmem:[%s2] sm:$0x1]
  %v79 = vld [vmem:[%s2 + $0x1] sm:$0x1]
  %v82 = vperm.slane %v78, 0
  %v83 = vperm.slane %v79, 0
  %v86 = vadd.f32 %v69, %v82
  %v87 = vadd.f32 %v71, %v82
  %v88 = vadd.f32 %v74, %v83
  %v89 = vadd.f32 %v76, %v83
  %v90 = vmul.f32 %v86, 0.5
  %v91 = vmul.f32 %v87, 0.5
  %v92 = vmul.f32 %v88, 0.5
  %v93 = vmul.f32 %v89, 0.5
  %v94 = vmul.f32 %v86, 0.044715
  %v95 = vmul.f32 %v87, 0.044715
  %v96 = vmul.f32 %v88, 0.044715
  %v97 = vmul.f32 %v89, 0.044715
  %v98 = vmul.f32 %v94, %v86
  %v99 = vmul.f32 %v95, %v87
  %v100 = vmul.f32 %v96, %v88
  %v101 = vmul.f32 %v97, %v89
  %v102 = vmul.f32 %v98, %v86
  %v103 = vmul.f32 %v99, %v87
  %v104 = vmul.f32 %v100, %v88
  %v105 = vmul.f32 %v101, %v89
  %v106 = vadd.f32 %v86, %v102
  %v107 = vadd.f32 %v87, %v103
  %v108 = vadd.f32 %v88, %v104
  %v109 = vadd.f32 %v89, %v105
  %v110 = vmul.f32 %v106, 0.7978846
  %v111 = vmul.f32 %v107, 0.7978846
  %v112 = vmul.f32 %v108, 0.7978846
  %v113 = vmul.f32 %v109, 0.7978846
  %v114 = vtanh.pop %v110
  %v115 = vtanh.pop %v111
  %v116 = vtanh.pop %v112
  %v117 = vtanh.pop %v113
  %v118 = vadd.f32 %v114, 1.0
  %v119 = vadd.f32 %v115, 1.0
  %v120 = vadd.f32 %v116, 1.0
  %v121 = vadd.f32 %v117, 1.0
  %v122 = vmul.f32 %v90, %v118
  %v123 = vmul.f32 %v91, %v119
  %v124 = vmul.f32 %v92, %v120
  %v125 = vmul.f32 %v93, %v121
  %v126 = vld [vmem:[%s3] sm:$0xf]
  %v127 = vld [vmem:[%s3 + $0x4] sm:$0xf]
  %v128 = vld [vmem:[%s3 + $0x8] sm:$0xf]
  %v129 = vld [vmem:[%s3 + $0xc] sm:$0xf]
  %v130 = vld [vmem:[%s3 + $0x10] sm:$0xf]
  %v131 = vld [vmem:[%s3 + $0x14] sm:$0xf]
  %v132 = vld [vmem:[%s3 + $0x18] sm:$0xf]
  %v133 = vld [vmem:[%s3 + $0x1c] sm:$0xf]
  %v134 = vld [vmem:[%s3 + $0x20] sm:$0xf]
  %v135 = vld [vmem:[%s3 + $0x24] sm:$0xf]
  %v136 = vld [vmem:[%s3 + $0x28] sm:$0xf]
  %v137 = vld [vmem:[%s3 + $0x2c] sm:$0xf]
  %v138 = vld [vmem:[%s4] sm:$0x1]
  %v139 = vld [vmem:[%s5] sm:$0xf]
  %v140 = vld [vmem:[%s5 + $0x4] sm:$0xf]
  %v141 = vld [vmem:[%s5 + $0x8] sm:$0xf]
  %v142 = vld [vmem:[%s5 + $0xc] sm:$0xf]
  %v143 = vld [vmem:[%s5 + $0x10] sm:$0xf]
  %v144 = vld [vmem:[%s5 + $0x14] sm:$0xf]
  %v145 = vld [vmem:[%s5 + $0x18] sm:$0xf]
  %v146 = vld [vmem:[%s5 + $0x1c] sm:$0xf]
  %v147 = vld [vmem:[%s5 + $0x20] sm:$0xf]
  %v148 = vld [vmem:[%s5 + $0x24] sm:$0xf]
  %v149 = vld [vmem:[%s5 + $0x28] sm:$0xf]
  %v150 = vld [vmem:[%s5 + $0x2c] sm:$0xf]
  %v151 = vld [vmem:[%s6] sm:$0x1]
  %v152 = vpack.c.bf16 %v122, %v122
  %v153 = vpack.c.bf16 %v123, %v123
  %v154 = vpack.c.bf16 %v124, %v124
  %v155 = vpack.c.bf16 %v125, %v125
  %v158 = vunpack.c.l.b16 %v153
  %v159 = vunpack.c.l.b16 %v155
  %v160 = vpack.c.b16 %v158, %v158
  %v161 = vpack.c.b16 %v159, %v159
  %v163 = vshrl.u32 %v160, 16
  %v165 = vrot.slane %v163, 3
  %v167 = vshrl.u32 %v161, 16
  %v169 = vrot.slane %v167, 3
  %v174 = vunpack.c.l.b16 %v152
  %v175 = vunpack.c.l.b16 %v154
  %v176 = vpack.c.b16 %v158, %v174
  %v177 = vpack.c.b16 %v159, %v175
  %v179 = vshrl.u32 %v176, 16
  %v181 = vrot.slane %v179, 7
  %v182 = vshll.u32 %v176, 16
  %v184 = vor.u32 %v181, %v182
  %v186 = vshrl.u32 %v177, 16
  %v188 = vrot.slane %v186, 7
  %v189 = vshll.u32 %v177, 16
  %v191 = vor.u32 %v188, %v189
  %vm194 = vcmask 1040384
  %vm195 = vsmask.f32 256
  %vm196 = vmand %vm194, %vm195
  %v197 = vsel %vm196, %v165, %v184
  %v198 = vsel %vm196, %v169, %v191
  %v199 = vrot.slane %v182, 1
  %v200 = vor.u32 %v179, %v199
  %v201 = vrot.slane %v189, 1
  %v202 = vor.u32 %v186, %v201
  %v205 = vpack.c.b16 %v174, %v174
  %v206 = vpack.c.b16 %v175, %v175
  %v208 = vshll.u32 %v205, 16
  %v210 = vrot.slane %v208, 1
  %v212 = vshll.u32 %v206, 16
  %v214 = vrot.slane %v212, 1
  %vm217 = vcmask 1047552
  %vm218 = vsmask.f32 7424
  %vm219 = vmand %vm217, %vm218
  %v220 = vsel %vm219, %v200, %v210
  %v221 = vsel %vm219, %v202, %v214
  %v226 = vunpack.c.l.b16 %v130
  %v227 = vunpack.c.l.b16 %v131
  %v228 = vunpack.c.l.b16 %v132
  %v229 = vunpack.c.l.b16 %v133
  %v230 = vpack.c.b16 %v227, %v226
  %v231 = vpack.c.b16 %v229, %v228
  %vm234 = vcmask 261120
  %v235 = vsel %vm234, %v176, 0
  %v237 = vsel %vm234, %v177, 0
  %239 = vmatpush.bf16.msra.mxu0 0
  %240 = vmatpush.bf16.msra.mxu0 0
  %241 = vmatpush.bf16.msra.mxu0 0
  %242 = vmatpush.bf16.msra.mxu0 0
  %243 = vmatpush.bf16.msra.mxu0 0
  %244 = vmatpush.bf16.msra.mxu0 0
  %245 = vmatpush.bf16.msra.mxu0 %v231
  %246 = vmatpush.bf16.msra.mxu0 %v230
  %247 = vmatmul.bf16.gmra.mxu0 %v235
  %v248 = vpop.f32.mrf.mxu0
  %v249 = vadd.f32 0.0, %v248
  %v250 = vpop.f32.mrf.mxu0
  %v251 = vadd.f32 0.0, %v250
  %252 = vmatmul.bf16.gmra.mxu0 %v237
  %v253 = vpop.f32.mrf.mxu0
  %v254 = vadd.f32 0.0, %v253
  %v255 = vpop.f32.mrf.mxu0
  %v256 = vadd.f32 0.0, %v255
  %257 = vdwg.mxu0
  %v262 = vunpack.c.l.b16 %v126
  %v263 = vunpack.c.l.b16 %v127
  %v264 = vunpack.c.l.b16 %v128
  %v265 = vunpack.c.l.b16 %v129
  %v266 = vpack.c.b16 %v263, %v262
  %v267 = vpack.c.b16 %v265, %v264
  %v271 = vsel %vm234, %v197, 0
  %v274 = vsel %vm234, %v198, 0
  %276 = vmatpush.bf16.msra.mxu0 0
  %277 = vmatpush.bf16.msra.mxu0 0
  %278 = vmatpush.bf16.msra.mxu0 0
  %279 = vmatpush.bf16.msra.mxu0 0
  %280 = vmatpush.bf16.msra.mxu0 0
  %281 = vmatpush.bf16.msra.mxu0 0
  %282 = vmatpush.bf16.msra.mxu0 %v267
  %283 = vmatpush.bf16.msra.mxu0 %v266
  %284 = vmatmul.bf16.gmra.mxu0 %v271
  %v285 = vpop.f32.mrf.mxu0
  %v286 = vadd.f32 %v249, %v285
  %v287 = vpop.f32.mrf.mxu0
  %v288 = vadd.f32 %v251, %v287
  %289 = vmatmul.bf16.gmra.mxu0 %v274
  %v290 = vpop.f32.mrf.mxu0
  %v291 = vadd.f32 %v254, %v290
  %v292 = vpop.f32.mrf.mxu0
  %v293 = vadd.f32 %v256, %v292
  %294 = vdwg.mxu0
  %v299 = vunpack.c.l.b16 %v134
  %v300 = vunpack.c.l.b16 %v135
  %v301 = vunpack.c.l.b16 %v136
  %v302 = vunpack.c.l.b16 %v137
  %v303 = vpack.c.b16 %v300, %v299
  %v304 = vpack.c.b16 %v302, %v301
  %v308 = vsel %vm234, %v220, 0
  %v311 = vsel %vm234, %v221, 0
  %313 = vmatpush.bf16.msra.mxu0 0
  %314 = vmatpush.bf16.msra.mxu0 0
  %315 = vmatpush.bf16.msra.mxu0 0
  %316 = vmatpush.bf16.msra.mxu0 0
  %317 = vmatpush.bf16.msra.mxu0 0
  %318 = vmatpush.bf16.msra.mxu0 0
  %319 = vmatpush.bf16.msra.mxu0 %v304
  %320 = vmatpush.bf16.msra.mxu0 %v303
  %321 = vmatmul.bf16.gmra.mxu0 %v308
  %v322 = vpop.f32.mrf.mxu0
  %v323 = vadd.f32 0.0, %v322
  %v324 = vpop.f32.mrf.mxu0
  %v325 = vadd.f32 0.0, %v324
  %326 = vmatmul.bf16.gmra.mxu0 %v311
  %v327 = vpop.f32.mrf.mxu0
  %v328 = vadd.f32 0.0, %v327
  %v329 = vpop.f32.mrf.mxu0
  %v330 = vadd.f32 0.0, %v329
  %331 = vdwg.mxu0
  %v332 = vadd.f32 %v286, %v323
  %v333 = vadd.f32 %v288, %v325
  %v334 = vadd.f32 %v291, %v328
  %v335 = vadd.f32 %v293, %v330
  %v337 = vperm.slane %v138, 0
  %v339 = vadd.f32 %v332, %v337
  %v340 = vadd.f32 %v333, %v337
  %v341 = vadd.f32 %v334, %v337
  %v342 = vadd.f32 %v335, %v337
  %v343 = vmul.f32 %v339, 0.5
  %v344 = vmul.f32 %v340, 0.5
  %v345 = vmul.f32 %v341, 0.5
  %v346 = vmul.f32 %v342, 0.5
  %v347 = vmul.f32 %v339, 0.044715
  %v348 = vmul.f32 %v340, 0.044715
  %v349 = vmul.f32 %v341, 0.044715
  %v350 = vmul.f32 %v342, 0.044715
  %v351 = vmul.f32 %v347, %v339
  %v352 = vmul.f32 %v348, %v340
  %v353 = vmul.f32 %v349, %v341
  %v354 = vmul.f32 %v350, %v342
  %v355 = vmul.f32 %v351, %v339
  %v356 = vmul.f32 %v352, %v340
  %v357 = vmul.f32 %v353, %v341
  %v358 = vmul.f32 %v354, %v342
  %v359 = vadd.f32 %v339, %v355
  %v360 = vadd.f32 %v340, %v356
  %v361 = vadd.f32 %v341, %v357
  %v362 = vadd.f32 %v342, %v358
  %v363 = vmul.f32 %v359, 0.7978846
  %v364 = vmul.f32 %v360, 0.7978846
  %v365 = vmul.f32 %v361, 0.7978846
  %v366 = vmul.f32 %v362, 0.7978846
  %v367 = vtanh.pop %v363
  %v368 = vtanh.pop %v364
  %v369 = vtanh.pop %v365
  %v370 = vtanh.pop %v366
  %v371 = vadd.f32 %v367, 1.0
  %v372 = vadd.f32 %v368, 1.0
  %v373 = vadd.f32 %v369, 1.0
  %v374 = vadd.f32 %v370, 1.0
  %v375 = vmul.f32 %v343, %v371
  %v376 = vmul.f32 %v344, %v372
  %v377 = vmul.f32 %v345, %v373
  %v378 = vmul.f32 %v346, %v374
  %v379 = vpack.c.bf16 %v375, %v375
  %v380 = vpack.c.bf16 %v376, %v376
  %v381 = vpack.c.bf16 %v377, %v377
  %v382 = vpack.c.bf16 %v378, %v378
  %v385 = vunpack.c.l.b16 %v380
  %v386 = vunpack.c.l.b16 %v382
  %v387 = vpack.c.b16 %v385, %v385
  %v388 = vpack.c.b16 %v386, %v386
  %v390 = vshrl.u32 %v387, 16
  %v392 = vrot.slane %v390, 3
  %v394 = vshrl.u32 %v388, 16
  %v396 = vrot.slane %v394, 3
  %v401 = vunpack.c.l.b16 %v379
  %v402 = vunpack.c.l.b16 %v381
  %v403 = vpack.c.b16 %v385, %v401
  %v404 = vpack.c.b16 %v386, %v402
  %v406 = vshrl.u32 %v403, 16
  %v408 = vrot.slane %v406, 7
  %v409 = vshll.u32 %v403, 16
  %v411 = vor.u32 %v408, %v409
  %v413 = vshrl.u32 %v404, 16
  %v415 = vrot.slane %v413, 7
  %v416 = vshll.u32 %v404, 16
  %v418 = vor.u32 %v415, %v416
  %v421 = vsel %vm196, %v392, %v411
  %v422 = vsel %vm196, %v396, %v418
  %v423 = vrot.slane %v409, 1
  %v424 = vor.u32 %v406, %v423
  %v425 = vrot.slane %v416, 1
  %v426 = vor.u32 %v413, %v425
  %v429 = vpack.c.b16 %v401, %v401
  %v430 = vpack.c.b16 %v402, %v402
  %v432 = vshll.u32 %v429, 16
  %v434 = vrot.slane %v432, 1
  %v436 = vshll.u32 %v430, 16
  %v438 = vrot.slane %v436, 1
  %v441 = vsel %vm219, %v424, %v434
  %v442 = vsel %vm219, %v426, %v438
  %v447 = vunpack.c.l.b16 %v143
  %v448 = vunpack.c.l.b16 %v144
  %v449 = vunpack.c.l.b16 %v145
  %v450 = vunpack.c.l.b16 %v146
  %v451 = vpack.c.b16 %v448, %v447
  %v452 = vpack.c.b16 %v450, %v449
  %v455 = vsel %vm234, %v403, 0
  %v457 = vsel %vm234, %v404, 0
  %459 = vmatpush.bf16.msra.mxu0 0
  %460 = vmatpush.bf16.msra.mxu0 0
  %461 = vmatpush.bf16.msra.mxu0 0
  %462 = vmatpush.bf16.msra.mxu0 0
  %463 = vmatpush.bf16.msra.mxu0 0
  %464 = vmatpush.bf16.msra.mxu0 0
  %465 = vmatpush.bf16.msra.mxu0 %v452
  %466 = vmatpush.bf16.msra.mxu0 %v451
  %467 = vmatmul.bf16.gmra.mxu0 %v455
  %v468 = vpop.f32.mrf.mxu0
  %v469 = vadd.f32 0.0, %v468
  %v470 = vpop.f32.mrf.mxu0
  %v471 = vadd.f32 0.0, %v470
  %472 = vmatmul.bf16.gmra.mxu0 %v457
  %v473 = vpop.f32.mrf.mxu0
  %v474 = vadd.f32 0.0, %v473
  %v475 = vpop.f32.mrf.mxu0
  %v476 = vadd.f32 0.0, %v475
  %477 = vdwg.mxu0
  %v482 = vunpack.c.l.b16 %v139
  %v483 = vunpack.c.l.b16 %v140
  %v484 = vunpack.c.l.b16 %v141
  %v485 = vunpack.c.l.b16 %v142
  %v486 = vpack.c.b16 %v483, %v482
  %v487 = vpack.c.b16 %v485, %v484
  %v491 = vsel %vm234, %v421, 0
  %v494 = vsel %vm234, %v422, 0
  %496 = vmatpush.bf16.msra.mxu0 0
  %497 = vmatpush.bf16.msra.mxu0 0
  %498 = vmatpush.bf16.msra.mxu0 0
  %499 = vmatpush.bf16.msra.mxu0 0
  %500 = vmatpush.bf16.msra.mxu0 0
  %501 = vmatpush.bf16.msra.mxu0 0
  %502 = vmatpush.bf16.msra.mxu0 %v487
  %503 = vmatpush.bf16.msra.mxu0 %v486
  %504 = vmatmul.bf16.gmra.mxu0 %v491
  %v505 = vpop.f32.mrf.mxu0
  %v506 = vadd.f32 %v469, %v505
  %v507 = vpop.f32.mrf.mxu0
  %v508 = vadd.f32 %v471, %v507
  %509 = vmatmul.bf16.gmra.mxu0 %v494
  %v510 = vpop.f32.mrf.mxu0
  %v511 = vadd.f32 %v474, %v510
  %v512 = vpop.f32.mrf.mxu0
  %v513 = vadd.f32 %v476, %v512
  %514 = vdwg.mxu0
  %v519 = vunpack.c.l.b16 %v147
  %v520 = vunpack.c.l.b16 %v148
  %v521 = vunpack.c.l.b16 %v149
  %v522 = vunpack.c.l.b16 %v150
  %v523 = vpack.c.b16 %v520, %v519
  %v524 = vpack.c.b16 %v522, %v521
  %v528 = vsel %vm234, %v441, 0
  %v531 = vsel %vm234, %v442, 0
  %533 = vmatpush.bf16.msra.mxu0 0
  %534 = vmatpush.bf16.msra.mxu0 0
  %535 = vmatpush.bf16.msra.mxu0 0
  %536 = vmatpush.bf16.msra.mxu0 0
  %537 = vmatpush.bf16.msra.mxu0 0
  %538 = vmatpush.bf16.msra.mxu0 0
  %539 = vmatpush.bf16.msra.mxu0 %v524
  %540 = vmatpush.bf16.msra.mxu0 %v523
  %541 = vmatmul.bf16.gmra.mxu0 %v528
  %v542 = vpop.f32.mrf.mxu0
  %v543 = vadd.f32 0.0, %v542
  %v544 = vpop.f32.mrf.mxu0
  %v545 = vadd.f32 0.0, %v544
  %546 = vmatmul.bf16.gmra.mxu0 %v531
  %v547 = vpop.f32.mrf.mxu0
  %v548 = vadd.f32 0.0, %v547
  %v549 = vpop.f32.mrf.mxu0
  %v550 = vadd.f32 0.0, %v549
  %551 = vdwg.mxu0
  %v552 = vadd.f32 %v506, %v543
  %v553 = vadd.f32 %v508, %v545
  %v554 = vadd.f32 %v511, %v548
  %v555 = vadd.f32 %v513, %v550
  %v557 = vperm.slane %v151, 0
  %v559 = vadd.f32 %v552, %v557
  %v560 = vadd.f32 %v553, %v557
  %v561 = vadd.f32 %v554, %v557
  %v562 = vadd.f32 %v555, %v557
  %v563 = vadd.f32 %v559, %v122
  %v564 = vadd.f32 %v560, %v123
  %v565 = vadd.f32 %v561, %v124
  %v566 = vadd.f32 %v562, %v125
  %v567 = vmul.f32 %v563, 0.5
  %v568 = vmul.f32 %v564, 0.5
  %v569 = vmul.f32 %v565, 0.5
  %v570 = vmul.f32 %v566, 0.5
  %v571 = vmul.f32 %v563, 0.044715
  %v572 = vmul.f32 %v564, 0.044715
  %v573 = vmul.f32 %v565, 0.044715
  %v574 = vmul.f32 %v566, 0.044715
  %v575 = vmul.f32 %v571, %v563
  %v576 = vmul.f32 %v572, %v564
  %v577 = vmul.f32 %v573, %v565
  %v578 = vmul.f32 %v574, %v566
  %v579 = vmul.f32 %v575, %v563
  %v580 = vmul.f32 %v576, %v564
  %v581 = vmul.f32 %v577, %v565
  %v582 = vmul.f32 %v578, %v566
  %v583 = vadd.f32 %v563, %v579
  %v584 = vadd.f32 %v564, %v580
  %v585 = vadd.f32 %v565, %v581
  %v586 = vadd.f32 %v566, %v582
  %v587 = vmul.f32 %v583, 0.7978846
  %v588 = vmul.f32 %v584, 0.7978846
  %v589 = vmul.f32 %v585, 0.7978846
  %v590 = vmul.f32 %v586, 0.7978846
  %v591 = vtanh.pop %v587
  %v592 = vtanh.pop %v588
  %v593 = vtanh.pop %v589
  %v594 = vtanh.pop %v590
  %v595 = vadd.f32 %v591, 1.0
  %v596 = vadd.f32 %v592, 1.0
  %v597 = vadd.f32 %v593, 1.0
  %v598 = vadd.f32 %v594, 1.0
  %v599 = vmul.f32 %v567, %v595
  %v600 = vmul.f32 %v568, %v596
  %v601 = vmul.f32 %v569, %v597
  %v602 = vmul.f32 %v570, %v598
  %s603 = scalar_lea.vmem %s3, 48
  %v604 = vld [vmem:[%s603] sm:$0xf]
  %v605 = vld [vmem:[%s603 + $0x4] sm:$0xf]
  %v606 = vld [vmem:[%s603 + $0x8] sm:$0xf]
  %v607 = vld [vmem:[%s603 + $0xc] sm:$0xf]
  %v608 = vld [vmem:[%s603 + $0x10] sm:$0xf]
  %v609 = vld [vmem:[%s603 + $0x14] sm:$0xf]
  %v610 = vld [vmem:[%s603 + $0x18] sm:$0xf]
  %v611 = vld [vmem:[%s603 + $0x1c] sm:$0xf]
  %v612 = vld [vmem:[%s603 + $0x20] sm:$0xf]
  %v613 = vld [vmem:[%s603 + $0x24] sm:$0xf]
  %v614 = vld [vmem:[%s603 + $0x28] sm:$0xf]
  %v615 = vld [vmem:[%s603 + $0x2c] sm:$0xf]
  %s616 = scalar_lea.vmem %s4, 1
  %v617 = vld [vmem:[%s616] sm:$0x1]
  %s618 = scalar_lea.vmem %s5, 48
  %v619 = vld [vmem:[%s618] sm:$0xf]
  %v620 = vld [vmem:[%s618 + $0x4] sm:$0xf]
  %v621 = vld [vmem:[%s618 + $0x8] sm:$0xf]
  %v622 = vld [vmem:[%s618 + $0xc] sm:$0xf]
  %v623 = vld [vmem:[%s618 + $0x10] sm:$0xf]
  %v624 = vld [vmem:[%s618 + $0x14] sm:$0xf]
  %v625 = vld [vmem:[%s618 + $0x18] sm:$0xf]
  %v626 = vld [vmem:[%s618 + $0x1c] sm:$0xf]
  %v627 = vld [vmem:[%s618 + $0x20] sm:$0xf]
  %v628 = vld [vmem:[%s618 + $0x24] sm:$0xf]
  %v629 = vld [vmem:[%s618 + $0x28] sm:$0xf]
  %v630 = vld [vmem:[%s618 + $0x2c] sm:$0xf]
  %s631 = scalar_lea.vmem %s6, 1
  %v632 = vld [vmem:[%s631] sm:$0x1]
  %v633 = vpack.c.bf16 %v599, %v599
  %v634 = vpack.c.bf16 %v600, %v600
  %v635 = vpack.c.bf16 %v601, %v601
  %v636 = vpack.c.bf16 %v602, %v602
  %v639 = vunpack.c.l.b16 %v634
  %v640 = vunpack.c.l.b16 %v636
  %v641 = vpack.c.b16 %v639, %v639
  %v642 = vpack.c.b16 %v640, %v640
  %v644 = vshrl.u32 %v641, 16
  %v646 = vrot.slane %v644, 3
  %v648 = vshrl.u32 %v642, 16
  %v650 = vrot.slane %v648, 3
  %v655 = vunpack.c.l.b16 %v633
  %v656 = vunpack.c.l.b16 %v635
  %v657 = vpack.c.b16 %v639, %v655
  %v658 = vpack.c.b16 %v640, %v656
  %v660 = vshrl.u32 %v657, 16
  %v662 = vrot.slane %v660, 7
  %v663 = vshll.u32 %v657, 16
  %v665 = vor.u32 %v662, %v663
  %v667 = vshrl.u32 %v658, 16
  %v669 = vrot.slane %v667, 7
  %v670 = vshll.u32 %v658, 16
  %v672 = vor.u32 %v669, %v670
  %v675 = vsel %vm196, %v646, %v665
  %v676 = vsel %vm196, %v650, %v672
  %v677 = vrot.slane %v663, 1
  %v678 = vor.u32 %v660, %v677
  %v679 = vrot.slane %v670, 1
  %v680 = vor.u32 %v667, %v679
  %v683 = vpack.c.b16 %v655, %v655
  %v684 = vpack.c.b16 %v656, %v656
  %v686 = vshll.u32 %v683, 16
  %v688 = vrot.slane %v686, 1
  %v690 = vshll.u32 %v684, 16
  %v692 = vrot.slane %v690, 1
  %v695 = vsel %vm219, %v678, %v688
  %v696 = vsel %vm219, %v680, %v692
  %v701 = vunpack.c.l.b16 %v608
  %v702 = vunpack.c.l.b16 %v609
  %v703 = vunpack.c.l.b16 %v610
  %v704 = vunpack.c.l.b16 %v611
  %v705 = vpack.c.b16 %v702, %v701
  %v706 = vpack.c.b16 %v704, %v703
  %v709 = vsel %vm234, %v657, 0
  %v711 = vsel %vm234, %v658, 0
  %713 = vmatpush.bf16.msra.mxu0 0
  %714 = vmatpush.bf16.msra.mxu0 0
  %715 = vmatpush.bf16.msra.mxu0 0
  %716 = vmatpush.bf16.msra.mxu0 0
  %717 = vmatpush.bf16.msra.mxu0 0
  %718 = vmatpush.bf16.msra.mxu0 0
  %719 = vmatpush.bf16.msra.mxu0 %v706
  %720 = vmatpush.bf16.msra.mxu0 %v705
  %721 = vmatmul.bf16.gmra.mxu0 %v709
  %v722 = vpop.f32.mrf.mxu0
  %v723 = vadd.f32 0.0, %v722
  %v724 = vpop.f32.mrf.mxu0
  %v725 = vadd.f32 0.0, %v724
  %726 = vmatmul.bf16.gmra.mxu0 %v711
  %v727 = vpop.f32.mrf.mxu0
  %v728 = vadd.f32 0.0, %v727
  %v729 = vpop.f32.mrf.mxu0
  %v730 = vadd.f32 0.0, %v729
  %731 = vdwg.mxu0
  %v736 = vunpack.c.l.b16 %v604
  %v737 = vunpack.c.l.b16 %v605
  %v738 = vunpack.c.l.b16 %v606
  %v739 = vunpack.c.l.b16 %v607
  %v740 = vpack.c.b16 %v737, %v736
  %v741 = vpack.c.b16 %v739, %v738
  %v745 = vsel %vm234, %v675, 0
  %v748 = vsel %vm234, %v676, 0
  %750 = vmatpush.bf16.msra.mxu0 0
  %751 = vmatpush.bf16.msra.mxu0 0
  %752 = vmatpush.bf16.msra.mxu0 0
  %753 = vmatpush.bf16.msra.mxu0 0
  %754 = vmatpush.bf16.msra.mxu0 0
  %755 = vmatpush.bf16.msra.mxu0 0
  %756 = vmatpush.bf16.msra.mxu0 %v741
  %757 = vmatpush.bf16.msra.mxu0 %v740
  %758 = vmatmul.bf16.gmra.mxu0 %v745
  %v759 = vpop.f32.mrf.mxu0
  %v760 = vadd.f32 %v723, %v759
  %v761 = vpop.f32.mrf.mxu0
  %v762 = vadd.f32 %v725, %v761
  %763 = vmatmul.bf16.gmra.mxu0 %v748
  %v764 = vpop.f32.mrf.mxu0
  %v765 = vadd.f32 %v728, %v764
  %v766 = vpop.f32.mrf.mxu0
  %v767 = vadd.f32 %v730, %v766
  %768 = vdwg.mxu0
  %v773 = vunpack.c.l.b16 %v612
  %v774 = vunpack.c.l.b16 %v613
  %v775 = vunpack.c.l.b16 %v614
  %v776 = vunpack.c.l.b16 %v615
  %v777 = vpack.c.b16 %v774, %v773
  %v778 = vpack.c.b16 %v776, %v775
  %v782 = vsel %vm234, %v695, 0
  %v785 = vsel %vm234, %v696, 0
  %787 = vmatpush.bf16.msra.mxu0 0
  %788 = vmatpush.bf16.msra.mxu0 0
  %789 = vmatpush.bf16.msra.mxu0 0
  %790 = vmatpush.bf16.msra.mxu0 0
  %791 = vmatpush.bf16.msra.mxu0 0
  %792 = vmatpush.bf16.msra.mxu0 0
  %793 = vmatpush.bf16.msra.mxu0 %v778
  %794 = vmatpush.bf16.msra.mxu0 %v777
  %795 = vmatmul.bf16.gmra.mxu0 %v782
  %v796 = vpop.f32.mrf.mxu0
  %v797 = vadd.f32 0.0, %v796
  %v798 = vpop.f32.mrf.mxu0
  %v799 = vadd.f32 0.0, %v798
  %800 = vmatmul.bf16.gmra.mxu0 %v785
  %v801 = vpop.f32.mrf.mxu0
  %v802 = vadd.f32 0.0, %v801
  %v803 = vpop.f32.mrf.mxu0
  %v804 = vadd.f32 0.0, %v803
  %805 = vdwg.mxu0
  %v806 = vadd.f32 %v760, %v797
  %v807 = vadd.f32 %v762, %v799
  %v808 = vadd.f32 %v765, %v802
  %v809 = vadd.f32 %v767, %v804
  %v811 = vperm.slane %v617, 0
  %v813 = vadd.f32 %v806, %v811
  %v814 = vadd.f32 %v807, %v811
  %v815 = vadd.f32 %v808, %v811
  %v816 = vadd.f32 %v809, %v811
  %v817 = vmul.f32 %v813, 0.5
  %v818 = vmul.f32 %v814, 0.5
  %v819 = vmul.f32 %v815, 0.5
  %v820 = vmul.f32 %v816, 0.5
  %v821 = vmul.f32 %v813, 0.044715
  %v822 = vmul.f32 %v814, 0.044715
  %v823 = vmul.f32 %v815, 0.044715
  %v824 = vmul.f32 %v816, 0.044715
  %v825 = vmul.f32 %v821, %v813
  %v826 = vmul.f32 %v822, %v814
  %v827 = vmul.f32 %v823, %v815
  %v828 = vmul.f32 %v824, %v816
  %v829 = vmul.f32 %v825, %v813
  %v830 = vmul.f32 %v826, %v814
  %v831 = vmul.f32 %v827, %v815
  %v832 = vmul.f32 %v828, %v816
  %v833 = vadd.f32 %v813, %v829
  %v834 = vadd.f32 %v814, %v830
  %v835 = vadd.f32 %v815, %v831
  %v836 = vadd.f32 %v816, %v832
  %v837 = vmul.f32 %v833, 0.7978846
  %v838 = vmul.f32 %v834, 0.7978846
  %v839 = vmul.f32 %v835, 0.7978846
  %v840 = vmul.f32 %v836, 0.7978846
  %v841 = vtanh.pop %v837
  %v842 = vtanh.pop %v838
  %v843 = vtanh.pop %v839
  %v844 = vtanh.pop %v840
  %v845 = vadd.f32 %v841, 1.0
  %v846 = vadd.f32 %v842, 1.0
  %v847 = vadd.f32 %v843, 1.0
  %v848 = vadd.f32 %v844, 1.0
  %v849 = vmul.f32 %v817, %v845
  %v850 = vmul.f32 %v818, %v846
  %v851 = vmul.f32 %v819, %v847
  %v852 = vmul.f32 %v820, %v848
  %v853 = vpack.c.bf16 %v849, %v849
  %v854 = vpack.c.bf16 %v850, %v850
  %v855 = vpack.c.bf16 %v851, %v851
  %v856 = vpack.c.bf16 %v852, %v852
  %v859 = vunpack.c.l.b16 %v854
  %v860 = vunpack.c.l.b16 %v856
  %v861 = vpack.c.b16 %v859, %v859
  %v862 = vpack.c.b16 %v860, %v860
  %v864 = vshrl.u32 %v861, 16
  %v866 = vrot.slane %v864, 3
  %v868 = vshrl.u32 %v862, 16
  %v870 = vrot.slane %v868, 3
  %v875 = vunpack.c.l.b16 %v853
  %v876 = vunpack.c.l.b16 %v855
  %v877 = vpack.c.b16 %v859, %v875
  %v878 = vpack.c.b16 %v860, %v876
  %v880 = vshrl.u32 %v877, 16
  %v882 = vrot.slane %v880, 7
  %v883 = vshll.u32 %v877, 16
  %v885 = vor.u32 %v882, %v883
  %v887 = vshrl.u32 %v878, 16
  %v889 = vrot.slane %v887, 7
  %v890 = vshll.u32 %v878, 16
  %v892 = vor.u32 %v889, %v890
  %v895 = vsel %vm196, %v866, %v885
  %v896 = vsel %vm196, %v870, %v892
  %v897 = vrot.slane %v883, 1
  %v898 = vor.u32 %v880, %v897
  %v899 = vrot.slane %v890, 1
  %v900 = vor.u32 %v887, %v899
  %v903 = vpack.c.b16 %v875, %v875
  %v904 = vpack.c.b16 %v876, %v876
  %v906 = vshll.u32 %v903, 16
  %v908 = vrot.slane %v906, 1
  %v910 = vshll.u32 %v904, 16
  %v912 = vrot.slane %v910, 1
  %v915 = vsel %vm219, %v898, %v908
  %v916 = vsel %vm219, %v900, %v912
  %v921 = vunpack.c.l.b16 %v623
  %v922 = vunpack.c.l.b16 %v624
  %v923 = vunpack.c.l.b16 %v625
  %v924 = vunpack.c.l.b16 %v626
  %v925 = vpack.c.b16 %v922, %v921
  %v926 = vpack.c.b16 %v924, %v923
  %v929 = vsel %vm234, %v877, 0
  %v931 = vsel %vm234, %v878, 0
  %933 = vmatpush.bf16.msra.mxu0 0
  %934 = vmatpush.bf16.msra.mxu0 0
  %935 = vmatpush.bf16.msra.mxu0 0
  %936 = vmatpush.bf16.msra.mxu0 0
  %937 = vmatpush.bf16.msra.mxu0 0
  %938 = vmatpush.bf16.msra.mxu0 0
  %939 = vmatpush.bf16.msra.mxu0 %v926
  %940 = vmatpush.bf16.msra.mxu0 %v925
  %941 = vmatmul.bf16.gmra.mxu0 %v929
  %v942 = vpop.f32.mrf.mxu0
  %v943 = vadd.f32 0.0, %v942
  %v944 = vpop.f32.mrf.mxu0
  %v945 = vadd.f32 0.0, %v944
  %946 = vmatmul.bf16.gmra.mxu0 %v931
  %v947 = vpop.f32.mrf.mxu0
  %v948 = vadd.f32 0.0, %v947
  %v949 = vpop.f32.mrf.mxu0
  %v950 = vadd.f32 0.0, %v949
  %951 = vdwg.mxu0
  %v956 = vunpack.c.l.b16 %v619
  %v957 = vunpack.c.l.b16 %v620
  %v958 = vunpack.c.l.b16 %v621
  %v959 = vunpack.c.l.b16 %v622
  %v960 = vpack.c.b16 %v957, %v956
  %v961 = vpack.c.b16 %v959, %v958
  %v965 = vsel %vm234, %v895, 0
  %v968 = vsel %vm234, %v896, 0
  %970 = vmatpush.bf16.msra.mxu0 0
  %971 = vmatpush.bf16.msra.mxu0 0
  %972 = vmatpush.bf16.msra.mxu0 0
  %973 = vmatpush.bf16.msra.mxu0 0
  %974 = vmatpush.bf16.msra.mxu0 0
  %975 = vmatpush.bf16.msra.mxu0 0
  %976 = vmatpush.bf16.msra.mxu0 %v961
  %977 = vmatpush.bf16.msra.mxu0 %v960
  %978 = vmatmul.bf16.gmra.mxu0 %v965
  %v979 = vpop.f32.mrf.mxu0
  %v980 = vadd.f32 %v943, %v979
  %v981 = vpop.f32.mrf.mxu0
  %v982 = vadd.f32 %v945, %v981
  %983 = vmatmul.bf16.gmra.mxu0 %v968
  %v984 = vpop.f32.mrf.mxu0
  %v985 = vadd.f32 %v948, %v984
  %v986 = vpop.f32.mrf.mxu0
  %v987 = vadd.f32 %v950, %v986
  %988 = vdwg.mxu0
  %v993 = vunpack.c.l.b16 %v627
  %v994 = vunpack.c.l.b16 %v628
  %v995 = vunpack.c.l.b16 %v629
  %v996 = vunpack.c.l.b16 %v630
  %v997 = vpack.c.b16 %v994, %v993
  %v998 = vpack.c.b16 %v996, %v995
  %v1002 = vsel %vm234, %v915, 0
  %v1005 = vsel %vm234, %v916, 0
  %1007 = vmatpush.bf16.msra.mxu0 0
  %1008 = vmatpush.bf16.msra.mxu0 0
  %1009 = vmatpush.bf16.msra.mxu0 0
  %1010 = vmatpush.bf16.msra.mxu0 0
  %1011 = vmatpush.bf16.msra.mxu0 0
  %1012 = vmatpush.bf16.msra.mxu0 0
  %1013 = vmatpush.bf16.msra.mxu0 %v998
  %1014 = vmatpush.bf16.msra.mxu0 %v997
  %1015 = vmatmul.bf16.gmra.mxu0 %v1002
  %v1016 = vpop.f32.mrf.mxu0
  %v1017 = vadd.f32 0.0, %v1016
  %v1018 = vpop.f32.mrf.mxu0
  %v1019 = vadd.f32 0.0, %v1018
  %1020 = vmatmul.bf16.gmra.mxu0 %v1005
  %v1021 = vpop.f32.mrf.mxu0
  %v1022 = vadd.f32 0.0, %v1021
  %v1023 = vpop.f32.mrf.mxu0
  %v1024 = vadd.f32 0.0, %v1023
  %1025 = vdwg.mxu0
  %v1026 = vadd.f32 %v980, %v1017
  %v1027 = vadd.f32 %v982, %v1019
  %v1028 = vadd.f32 %v985, %v1022
  %v1029 = vadd.f32 %v987, %v1024
  %v1031 = vperm.slane %v632, 0
  %v1033 = vadd.f32 %v1026, %v1031
  %v1034 = vadd.f32 %v1027, %v1031
  %v1035 = vadd.f32 %v1028, %v1031
  %v1036 = vadd.f32 %v1029, %v1031
  %v1037 = vadd.f32 %v1033, %v599
  %v1038 = vadd.f32 %v1034, %v600
  %v1039 = vadd.f32 %v1035, %v601
  %v1040 = vadd.f32 %v1036, %v602
  %v1041 = vmul.f32 %v1037, 0.5
  %v1042 = vmul.f32 %v1038, 0.5
  %v1043 = vmul.f32 %v1039, 0.5
  %v1044 = vmul.f32 %v1040, 0.5
  %v1045 = vmul.f32 %v1037, 0.044715
  %v1046 = vmul.f32 %v1038, 0.044715
  %v1047 = vmul.f32 %v1039, 0.044715
  %v1048 = vmul.f32 %v1040, 0.044715
  %v1049 = vmul.f32 %v1045, %v1037
  %v1050 = vmul.f32 %v1046, %v1038
  %v1051 = vmul.f32 %v1047, %v1039
  %v1052 = vmul.f32 %v1048, %v1040
  %v1053 = vmul.f32 %v1049, %v1037
  %v1054 = vmul.f32 %v1050, %v1038
  %v1055 = vmul.f32 %v1051, %v1039
  %v1056 = vmul.f32 %v1052, %v1040
  %v1057 = vadd.f32 %v1037, %v1053
  %v1058 = vadd.f32 %v1038, %v1054
  %v1059 = vadd.f32 %v1039, %v1055
  %v1060 = vadd.f32 %v1040, %v1056
  %v1061 = vmul.f32 %v1057, 0.7978846
  %v1062 = vmul.f32 %v1058, 0.7978846
  %v1063 = vmul.f32 %v1059, 0.7978846
  %v1064 = vmul.f32 %v1060, 0.7978846
  %v1065 = vtanh.pop %v1061
  %v1066 = vtanh.pop %v1062
  %v1067 = vtanh.pop %v1063
  %v1068 = vtanh.pop %v1064
  %v1069 = vadd.f32 %v1065, 1.0
  %v1070 = vadd.f32 %v1066, 1.0
  %v1071 = vadd.f32 %v1067, 1.0
  %v1072 = vadd.f32 %v1068, 1.0
  %v1073 = vmul.f32 %v1041, %v1069
  %v1074 = vmul.f32 %v1042, %v1070
  %v1075 = vmul.f32 %v1043, %v1071
  %v1076 = vmul.f32 %v1044, %v1072
  %s1077 = scalar_lea.vmem %s3, 96
  %v1078 = vld [vmem:[%s1077] sm:$0xf]
  %v1079 = vld [vmem:[%s1077 + $0x4] sm:$0xf]
  %v1080 = vld [vmem:[%s1077 + $0x8] sm:$0xf]
  %v1081 = vld [vmem:[%s1077 + $0xc] sm:$0xf]
  %v1082 = vld [vmem:[%s1077 + $0x10] sm:$0xf]
  %v1083 = vld [vmem:[%s1077 + $0x14] sm:$0xf]
  %v1084 = vld [vmem:[%s1077 + $0x18] sm:$0xf]
  %v1085 = vld [vmem:[%s1077 + $0x1c] sm:$0xf]
  %v1086 = vld [vmem:[%s1077 + $0x20] sm:$0xf]
  %v1087 = vld [vmem:[%s1077 + $0x24] sm:$0xf]
  %v1088 = vld [vmem:[%s1077 + $0x28] sm:$0xf]
  %v1089 = vld [vmem:[%s1077 + $0x2c] sm:$0xf]
  %s1090 = scalar_lea.vmem %s4, 2
  %v1091 = vld [vmem:[%s1090] sm:$0x1]
  %s1092 = scalar_lea.vmem %s5, 96
  %v1093 = vld [vmem:[%s1092] sm:$0xf]
  %v1094 = vld [vmem:[%s1092 + $0x4] sm:$0xf]
  %v1095 = vld [vmem:[%s1092 + $0x8] sm:$0xf]
  %v1096 = vld [vmem:[%s1092 + $0xc] sm:$0xf]
  %v1097 = vld [vmem:[%s1092 + $0x10] sm:$0xf]
  %v1098 = vld [vmem:[%s1092 + $0x14] sm:$0xf]
  %v1099 = vld [vmem:[%s1092 + $0x18] sm:$0xf]
  %v1100 = vld [vmem:[%s1092 + $0x1c] sm:$0xf]
  %v1101 = vld [vmem:[%s1092 + $0x20] sm:$0xf]
  %v1102 = vld [vmem:[%s1092 + $0x24] sm:$0xf]
  %v1103 = vld [vmem:[%s1092 + $0x28] sm:$0xf]
  %v1104 = vld [vmem:[%s1092 + $0x2c] sm:$0xf]
  %s1105 = scalar_lea.vmem %s6, 2
  %v1106 = vld [vmem:[%s1105] sm:$0x1]
  %v1107 = vpack.c.bf16 %v1073, %v1073
  %v1108 = vpack.c.bf16 %v1074, %v1074
  %v1109 = vpack.c.bf16 %v1075, %v1075
  %v1110 = vpack.c.bf16 %v1076, %v1076
  %v1113 = vunpack.c.l.b16 %v1108
  %v1114 = vunpack.c.l.b16 %v1110
  %v1115 = vpack.c.b16 %v1113, %v1113
  %v1116 = vpack.c.b16 %v1114, %v1114
  %v1118 = vshrl.u32 %v1115, 16
  %v1120 = vrot.slane %v1118, 3
  %v1122 = vshrl.u32 %v1116, 16
  %v1124 = vrot.slane %v1122, 3
  %v1129 = vunpack.c.l.b16 %v1107
  %v1130 = vunpack.c.l.b16 %v1109
  %v1131 = vpack.c.b16 %v1113, %v1129
  %v1132 = vpack.c.b16 %v1114, %v1130
  %v1134 = vshrl.u32 %v1131, 16
  %v1136 = vrot.slane %v1134, 7
  %v1137 = vshll.u32 %v1131, 16
  %v1139 = vor.u32 %v1136, %v1137
  %v1141 = vshrl.u32 %v1132, 16
  %v1143 = vrot.slane %v1141, 7
  %v1144 = vshll.u32 %v1132, 16
  %v1146 = vor.u32 %v1143, %v1144
  %v1149 = vsel %vm196, %v1120, %v1139
  %v1150 = vsel %vm196, %v1124, %v1146
  %v1151 = vrot.slane %v1137, 1
  %v1152 = vor.u32 %v1134, %v1151
  %v1153 = vrot.slane %v1144, 1
  %v1154 = vor.u32 %v1141, %v1153
  %v1157 = vpack.c.b16 %v1129, %v1129
  %v1158 = vpack.c.b16 %v1130, %v1130
  %v1160 = vshll.u32 %v1157, 16
  %v1162 = vrot.slane %v1160, 1
  %v1164 = vshll.u32 %v1158, 16
  %v1166 = vrot.slane %v1164, 1
  %v1169 = vsel %vm219, %v1152, %v1162
  %v1170 = vsel %vm219, %v1154, %v1166
  %v1175 = vunpack.c.l.b16 %v1082
  %v1176 = vunpack.c.l.b16 %v1083
  %v1177 = vunpack.c.l.b16 %v1084
  %v1178 = vunpack.c.l.b16 %v1085
  %v1179 = vpack.c.b16 %v1176, %v1175
  %v1180 = vpack.c.b16 %v1178, %v1177
  %v1183 = vsel %vm234, %v1131, 0
  %v1185 = vsel %vm234, %v1132, 0
  %1187 = vmatpush.bf16.msra.mxu0 0
  %1188 = vmatpush.bf16.msra.mxu0 0
  %1189 = vmatpush.bf16.msra.mxu0 0
  %1190 = vmatpush.bf16.msra.mxu0 0
  %1191 = vmatpush.bf16.msra.mxu0 0
  %1192 = vmatpush.bf16.msra.mxu0 0
  %1193 = vmatpush.bf16.msra.mxu0 %v1180
  %1194 = vmatpush.bf16.msra.mxu0 %v1179
  %1195 = vmatmul.bf16.gmra.mxu0 %v1183
  %v1196 = vpop.f32.mrf.mxu0
  %v1197 = vadd.f32 0.0, %v1196
  %v1198 = vpop.f32.mrf.mxu0
  %v1199 = vadd.f32 0.0, %v1198
  %1200 = vmatmul.bf16.gmra.mxu0 %v1185
  %v1201 = vpop.f32.mrf.mxu0
  %v1202 = vadd.f32 0.0, %v1201
  %v1203 = vpop.f32.mrf.mxu0
  %v1204 = vadd.f32 0.0, %v1203
  %1205 = vdwg.mxu0
  %v1210 = vunpack.c.l.b16 %v1078
  %v1211 = vunpack.c.l.b16 %v1079
  %v1212 = vunpack.c.l.b16 %v1080
  %v1213 = vunpack.c.l.b16 %v1081
  %v1214 = vpack.c.b16 %v1211, %v1210
  %v1215 = vpack.c.b16 %v1213, %v1212
  %v1219 = vsel %vm234, %v1149, 0
  %v1222 = vsel %vm234, %v1150, 0
  %1224 = vmatpush.bf16.msra.mxu0 0
  %1225 = vmatpush.bf16.msra.mxu0 0
  %1226 = vmatpush.bf16.msra.mxu0 0
  %1227 = vmatpush.bf16.msra.mxu0 0
  %1228 = vmatpush.bf16.msra.mxu0 0
  %1229 = vmatpush.bf16.msra.mxu0 0
  %1230 = vmatpush.bf16.msra.mxu0 %v1215
  %1231 = vmatpush.bf16.msra.mxu0 %v1214
  %1232 = vmatmul.bf16.gmra.mxu0 %v1219
  %v1233 = vpop.f32.mrf.mxu0
  %v1234 = vadd.f32 %v1197, %v1233
  %v1235 = vpop.f32.mrf.mxu0
  %v1236 = vadd.f32 %v1199, %v1235
  %1237 = vmatmul.bf16.gmra.mxu0 %v1222
  %v1238 = vpop.f32.mrf.mxu0
  %v1239 = vadd.f32 %v1202, %v1238
  %v1240 = vpop.f32.mrf.mxu0
  %v1241 = vadd.f32 %v1204, %v1240
  %1242 = vdwg.mxu0
  %v1247 = vunpack.c.l.b16 %v1086
  %v1248 = vunpack.c.l.b16 %v1087
  %v1249 = vunpack.c.l.b16 %v1088
  %v1250 = vunpack.c.l.b16 %v1089
  %v1251 = vpack.c.b16 %v1248, %v1247
  %v1252 = vpack.c.b16 %v1250, %v1249
  %v1256 = vsel %vm234, %v1169, 0
  %v1259 = vsel %vm234, %v1170, 0
  %1261 = vmatpush.bf16.msra.mxu0 0
  %1262 = vmatpush.bf16.msra.mxu0 0
  %1263 = vmatpush.bf16.msra.mxu0 0
  %1264 = vmatpush.bf16.msra.mxu0 0
  %1265 = vmatpush.bf16.msra.mxu0 0
  %1266 = vmatpush.bf16.msra.mxu0 0
  %1267 = vmatpush.bf16.msra.mxu0 %v1252
  %1268 = vmatpush.bf16.msra.mxu0 %v1251
  %1269 = vmatmul.bf16.gmra.mxu0 %v1256
  %v1270 = vpop.f32.mrf.mxu0
  %v1271 = vadd.f32 0.0, %v1270
  %v1272 = vpop.f32.mrf.mxu0
  %v1273 = vadd.f32 0.0, %v1272
  %1274 = vmatmul.bf16.gmra.mxu0 %v1259
  %v1275 = vpop.f32.mrf.mxu0
  %v1276 = vadd.f32 0.0, %v1275
  %v1277 = vpop.f32.mrf.mxu0
  %v1278 = vadd.f32 0.0, %v1277
  %1279 = vdwg.mxu0
  %v1280 = vadd.f32 %v1234, %v1271
  %v1281 = vadd.f32 %v1236, %v1273
  %v1282 = vadd.f32 %v1239, %v1276
  %v1283 = vadd.f32 %v1241, %v1278
  %v1285 = vperm.slane %v1091, 0
  %v1287 = vadd.f32 %v1280, %v1285
  %v1288 = vadd.f32 %v1281, %v1285
  %v1289 = vadd.f32 %v1282, %v1285
  %v1290 = vadd.f32 %v1283, %v1285
  %v1291 = vmul.f32 %v1287, 0.5
  %v1292 = vmul.f32 %v1288, 0.5
  %v1293 = vmul.f32 %v1289, 0.5
  %v1294 = vmul.f32 %v1290, 0.5
  %v1295 = vmul.f32 %v1287, 0.044715
  %v1296 = vmul.f32 %v1288, 0.044715
  %v1297 = vmul.f32 %v1289, 0.044715
  %v1298 = vmul.f32 %v1290, 0.044715
  %v1299 = vmul.f32 %v1295, %v1287
  %v1300 = vmul.f32 %v1296, %v1288
  %v1301 = vmul.f32 %v1297, %v1289
  %v1302 = vmul.f32 %v1298, %v1290
  %v1303 = vmul.f32 %v1299, %v1287
  %v1304 = vmul.f32 %v1300, %v1288
  %v1305 = vmul.f32 %v1301, %v1289
  %v1306 = vmul.f32 %v1302, %v1290
  %v1307 = vadd.f32 %v1287, %v1303
  %v1308 = vadd.f32 %v1288, %v1304
  %v1309 = vadd.f32 %v1289, %v1305
  %v1310 = vadd.f32 %v1290, %v1306
  %v1311 = vmul.f32 %v1307, 0.7978846
  %v1312 = vmul.f32 %v1308, 0.7978846
  %v1313 = vmul.f32 %v1309, 0.7978846
  %v1314 = vmul.f32 %v1310, 0.7978846
  %v1315 = vtanh.pop %v1311
  %v1316 = vtanh.pop %v1312
  %v1317 = vtanh.pop %v1313
  %v1318 = vtanh.pop %v1314
  %v1319 = vadd.f32 %v1315, 1.0
  %v1320 = vadd.f32 %v1316, 1.0
  %v1321 = vadd.f32 %v1317, 1.0
  %v1322 = vadd.f32 %v1318, 1.0
  %v1323 = vmul.f32 %v1291, %v1319
  %v1324 = vmul.f32 %v1292, %v1320
  %v1325 = vmul.f32 %v1293, %v1321
  %v1326 = vmul.f32 %v1294, %v1322
  %v1327 = vpack.c.bf16 %v1323, %v1323
  %v1328 = vpack.c.bf16 %v1324, %v1324
  %v1329 = vpack.c.bf16 %v1325, %v1325
  %v1330 = vpack.c.bf16 %v1326, %v1326
  %v1333 = vunpack.c.l.b16 %v1328
  %v1334 = vunpack.c.l.b16 %v1330
  %v1335 = vpack.c.b16 %v1333, %v1333
  %v1336 = vpack.c.b16 %v1334, %v1334
  %v1338 = vshrl.u32 %v1335, 16
  %v1340 = vrot.slane %v1338, 3
  %v1342 = vshrl.u32 %v1336, 16
  %v1344 = vrot.slane %v1342, 3
  %v1349 = vunpack.c.l.b16 %v1327
  %v1350 = vunpack.c.l.b16 %v1329
  %v1351 = vpack.c.b16 %v1333, %v1349
  %v1352 = vpack.c.b16 %v1334, %v1350
  %v1354 = vshrl.u32 %v1351, 16
  %v1356 = vrot.slane %v1354, 7
  %v1357 = vshll.u32 %v1351, 16
  %v1359 = vor.u32 %v1356, %v1357
  %v1361 = vshrl.u32 %v1352, 16
  %v1363 = vrot.slane %v1361, 7
  %v1364 = vshll.u32 %v1352, 16
  %v1366 = vor.u32 %v1363, %v1364
  %v1369 = vsel %vm196, %v1340, %v1359
  %v1370 = vsel %vm196, %v1344, %v1366
  %v1371 = vrot.slane %v1357, 1
  %v1372 = vor.u32 %v1354, %v1371
  %v1373 = vrot.slane %v1364, 1
  %v1374 = vor.u32 %v1361, %v1373
  %v1377 = vpack.c.b16 %v1349, %v1349
  %v1378 = vpack.c.b16 %v1350, %v1350
  %v1380 = vshll.u32 %v1377, 16
  %v1382 = vrot.slane %v1380, 1
  %v1384 = vshll.u32 %v1378, 16
  %v1386 = vrot.slane %v1384, 1
  %v1389 = vsel %vm219, %v1372, %v1382
  %v1390 = vsel %vm219, %v1374, %v1386
  %v1395 = vunpack.c.l.b16 %v1097
  %v1396 = vunpack.c.l.b16 %v1098
  %v1397 = vunpack.c.l.b16 %v1099
  %v1398 = vunpack.c.l.b16 %v1100
  %v1399 = vpack.c.b16 %v1396, %v1395
  %v1400 = vpack.c.b16 %v1398, %v1397
  %v1403 = vsel %vm234, %v1351, 0
  %v1405 = vsel %vm234, %v1352, 0
  %1407 = vmatpush.bf16.msra.mxu0 0
  %1408 = vmatpush.bf16.msra.mxu0 0
  %1409 = vmatpush.bf16.msra.mxu0 0
  %1410 = vmatpush.bf16.msra.mxu0 0
  %1411 = vmatpush.bf16.msra.mxu0 0
  %1412 = vmatpush.bf16.msra.mxu0 0
  %1413 = vmatpush.bf16.msra.mxu0 %v1400
  %1414 = vmatpush.bf16.msra.mxu0 %v1399
  %1415 = vmatmul.bf16.gmra.mxu0 %v1403
  %v1416 = vpop.f32.mrf.mxu0
  %v1417 = vadd.f32 0.0, %v1416
  %v1418 = vpop.f32.mrf.mxu0
  %v1419 = vadd.f32 0.0, %v1418
  %1420 = vmatmul.bf16.gmra.mxu0 %v1405
  %v1421 = vpop.f32.mrf.mxu0
  %v1422 = vadd.f32 0.0, %v1421
  %v1423 = vpop.f32.mrf.mxu0
  %v1424 = vadd.f32 0.0, %v1423
  %1425 = vdwg.mxu0
  %v1430 = vunpack.c.l.b16 %v1093
  %v1431 = vunpack.c.l.b16 %v1094
  %v1432 = vunpack.c.l.b16 %v1095
  %v1433 = vunpack.c.l.b16 %v1096
  %v1434 = vpack.c.b16 %v1431, %v1430
  %v1435 = vpack.c.b16 %v1433, %v1432
  %v1439 = vsel %vm234, %v1369, 0
  %v1442 = vsel %vm234, %v1370, 0
  %1444 = vmatpush.bf16.msra.mxu0 0
  %1445 = vmatpush.bf16.msra.mxu0 0
  %1446 = vmatpush.bf16.msra.mxu0 0
  %1447 = vmatpush.bf16.msra.mxu0 0
  %1448 = vmatpush.bf16.msra.mxu0 0
  %1449 = vmatpush.bf16.msra.mxu0 0
  %1450 = vmatpush.bf16.msra.mxu0 %v1435
  %1451 = vmatpush.bf16.msra.mxu0 %v1434
  %1452 = vmatmul.bf16.gmra.mxu0 %v1439
  %v1453 = vpop.f32.mrf.mxu0
  %v1454 = vadd.f32 %v1417, %v1453
  %v1455 = vpop.f32.mrf.mxu0
  %v1456 = vadd.f32 %v1419, %v1455
  %1457 = vmatmul.bf16.gmra.mxu0 %v1442
  %v1458 = vpop.f32.mrf.mxu0
  %v1459 = vadd.f32 %v1422, %v1458
  %v1460 = vpop.f32.mrf.mxu0
  %v1461 = vadd.f32 %v1424, %v1460
  %1462 = vdwg.mxu0
  %v1467 = vunpack.c.l.b16 %v1101
  %v1468 = vunpack.c.l.b16 %v1102
  %v1469 = vunpack.c.l.b16 %v1103
  %v1470 = vunpack.c.l.b16 %v1104
  %v1471 = vpack.c.b16 %v1468, %v1467
  %v1472 = vpack.c.b16 %v1470, %v1469
  %v1476 = vsel %vm234, %v1389, 0
  %v1479 = vsel %vm234, %v1390, 0
  %1481 = vmatpush.bf16.msra.mxu0 0
  %1482 = vmatpush.bf16.msra.mxu0 0
  %1483 = vmatpush.bf16.msra.mxu0 0
  %1484 = vmatpush.bf16.msra.mxu0 0
  %1485 = vmatpush.bf16.msra.mxu0 0
  %1486 = vmatpush.bf16.msra.mxu0 0
  %1487 = vmatpush.bf16.msra.mxu0 %v1472
  %1488 = vmatpush.bf16.msra.mxu0 %v1471
  %1489 = vmatmul.bf16.gmra.mxu0 %v1476
  %v1490 = vpop.f32.mrf.mxu0
  %v1491 = vadd.f32 0.0, %v1490
  %v1492 = vpop.f32.mrf.mxu0
  %v1493 = vadd.f32 0.0, %v1492
  %1494 = vmatmul.bf16.gmra.mxu0 %v1479
  %v1495 = vpop.f32.mrf.mxu0
  %v1496 = vadd.f32 0.0, %v1495
  %v1497 = vpop.f32.mrf.mxu0
  %v1498 = vadd.f32 0.0, %v1497
  %1499 = vdwg.mxu0
  %v1500 = vadd.f32 %v1454, %v1491
  %v1501 = vadd.f32 %v1456, %v1493
  %v1502 = vadd.f32 %v1459, %v1496
  %v1503 = vadd.f32 %v1461, %v1498
  %v1505 = vperm.slane %v1106, 0
  %v1507 = vadd.f32 %v1500, %v1505
  %v1508 = vadd.f32 %v1501, %v1505
  %v1509 = vadd.f32 %v1502, %v1505
  %v1510 = vadd.f32 %v1503, %v1505
  %v1511 = vadd.f32 %v1507, %v1073
  %v1512 = vadd.f32 %v1508, %v1074
  %v1513 = vadd.f32 %v1509, %v1075
  %v1514 = vadd.f32 %v1510, %v1076
  %v1515 = vmul.f32 %v1511, 0.5
  %v1516 = vmul.f32 %v1512, 0.5
  %v1517 = vmul.f32 %v1513, 0.5
  %v1518 = vmul.f32 %v1514, 0.5
  %v1519 = vmul.f32 %v1511, 0.044715
  %v1520 = vmul.f32 %v1512, 0.044715
  %v1521 = vmul.f32 %v1513, 0.044715
  %v1522 = vmul.f32 %v1514, 0.044715
  %v1523 = vmul.f32 %v1519, %v1511
  %v1524 = vmul.f32 %v1520, %v1512
  %v1525 = vmul.f32 %v1521, %v1513
  %v1526 = vmul.f32 %v1522, %v1514
  %v1527 = vmul.f32 %v1523, %v1511
  %v1528 = vmul.f32 %v1524, %v1512
  %v1529 = vmul.f32 %v1525, %v1513
  %v1530 = vmul.f32 %v1526, %v1514
  %v1531 = vadd.f32 %v1511, %v1527
  %v1532 = vadd.f32 %v1512, %v1528
  %v1533 = vadd.f32 %v1513, %v1529
  %v1534 = vadd.f32 %v1514, %v1530
  %v1535 = vmul.f32 %v1531, 0.7978846
  %v1536 = vmul.f32 %v1532, 0.7978846
  %v1537 = vmul.f32 %v1533, 0.7978846
  %v1538 = vmul.f32 %v1534, 0.7978846
  %v1539 = vtanh.pop %v1535
  %v1540 = vtanh.pop %v1536
  %v1541 = vtanh.pop %v1537
  %v1542 = vtanh.pop %v1538
  %v1543 = vadd.f32 %v1539, 1.0
  %v1544 = vadd.f32 %v1540, 1.0
  %v1545 = vadd.f32 %v1541, 1.0
  %v1546 = vadd.f32 %v1542, 1.0
  %v1547 = vmul.f32 %v1515, %v1543
  %v1548 = vmul.f32 %v1516, %v1544
  %v1549 = vmul.f32 %v1517, %v1545
  %v1550 = vmul.f32 %v1518, %v1546
  %s1551 = scalar_lea.vmem %s3, 144
  %v1552 = vld [vmem:[%s1551] sm:$0xf]
  %v1553 = vld [vmem:[%s1551 + $0x4] sm:$0xf]
  %v1554 = vld [vmem:[%s1551 + $0x8] sm:$0xf]
  %v1555 = vld [vmem:[%s1551 + $0xc] sm:$0xf]
  %v1556 = vld [vmem:[%s1551 + $0x10] sm:$0xf]
  %v1557 = vld [vmem:[%s1551 + $0x14] sm:$0xf]
  %v1558 = vld [vmem:[%s1551 + $0x18] sm:$0xf]
  %v1559 = vld [vmem:[%s1551 + $0x1c] sm:$0xf]
  %v1560 = vld [vmem:[%s1551 + $0x20] sm:$0xf]
  %v1561 = vld [vmem:[%s1551 + $0x24] sm:$0xf]
  %v1562 = vld [vmem:[%s1551 + $0x28] sm:$0xf]
  %v1563 = vld [vmem:[%s1551 + $0x2c] sm:$0xf]
  %s1564 = scalar_lea.vmem %s4, 3
  %v1565 = vld [vmem:[%s1564] sm:$0x1]
  %s1566 = scalar_lea.vmem %s5, 144
  %v1567 = vld [vmem:[%s1566] sm:$0xf]
  %v1568 = vld [vmem:[%s1566 + $0x4] sm:$0xf]
  %v1569 = vld [vmem:[%s1566 + $0x8] sm:$0xf]
  %v1570 = vld [vmem:[%s1566 + $0xc] sm:$0xf]
  %v1571 = vld [vmem:[%s1566 + $0x10] sm:$0xf]
  %v1572 = vld [vmem:[%s1566 + $0x14] sm:$0xf]
  %v1573 = vld [vmem:[%s1566 + $0x18] sm:$0xf]
  %v1574 = vld [vmem:[%s1566 + $0x1c] sm:$0xf]
  %v1575 = vld [vmem:[%s1566 + $0x20] sm:$0xf]
  %v1576 = vld [vmem:[%s1566 + $0x24] sm:$0xf]
  %v1577 = vld [vmem:[%s1566 + $0x28] sm:$0xf]
  %v1578 = vld [vmem:[%s1566 + $0x2c] sm:$0xf]
  %s1579 = scalar_lea.vmem %s6, 3
  %v1580 = vld [vmem:[%s1579] sm:$0x1]
  %v1581 = vpack.c.bf16 %v1547, %v1547
  %v1582 = vpack.c.bf16 %v1548, %v1548
  %v1583 = vpack.c.bf16 %v1549, %v1549
  %v1584 = vpack.c.bf16 %v1550, %v1550
  %v1587 = vunpack.c.l.b16 %v1582
  %v1588 = vunpack.c.l.b16 %v1584
  %v1589 = vpack.c.b16 %v1587, %v1587
  %v1590 = vpack.c.b16 %v1588, %v1588
  %v1592 = vshrl.u32 %v1589, 16
  %v1594 = vrot.slane %v1592, 3
  %v1596 = vshrl.u32 %v1590, 16
  %v1598 = vrot.slane %v1596, 3
  %v1603 = vunpack.c.l.b16 %v1581
  %v1604 = vunpack.c.l.b16 %v1583
  %v1605 = vpack.c.b16 %v1587, %v1603
  %v1606 = vpack.c.b16 %v1588, %v1604
  %v1608 = vshrl.u32 %v1605, 16
  %v1610 = vrot.slane %v1608, 7
  %v1611 = vshll.u32 %v1605, 16
  %v1613 = vor.u32 %v1610, %v1611
  %v1615 = vshrl.u32 %v1606, 16
  %v1617 = vrot.slane %v1615, 7
  %v1618 = vshll.u32 %v1606, 16
  %v1620 = vor.u32 %v1617, %v1618
  %v1623 = vsel %vm196, %v1594, %v1613
  %v1624 = vsel %vm196, %v1598, %v1620
  %v1625 = vrot.slane %v1611, 1
  %v1626 = vor.u32 %v1608, %v1625
  %v1627 = vrot.slane %v1618, 1
  %v1628 = vor.u32 %v1615, %v1627
  %v1631 = vpack.c.b16 %v1603, %v1603
  %v1632 = vpack.c.b16 %v1604, %v1604
  %v1634 = vshll.u32 %v1631, 16
  %v1636 = vrot.slane %v1634, 1
  %v1638 = vshll.u32 %v1632, 16
  %v1640 = vrot.slane %v1638, 1
  %v1643 = vsel %vm219, %v1626, %v1636
  %v1644 = vsel %vm219, %v1628, %v1640
  %v1649 = vunpack.c.l.b16 %v1556
  %v1650 = vunpack.c.l.b16 %v1557
  %v1651 = vunpack.c.l.b16 %v1558
  %v1652 = vunpack.c.l.b16 %v1559
  %v1653 = vpack.c.b16 %v1650, %v1649
  %v1654 = vpack.c.b16 %v1652, %v1651
  %v1657 = vsel %vm234, %v1605, 0
  %v1659 = vsel %vm234, %v1606, 0
  %1661 = vmatpush.bf16.msra.mxu0 0
  %1662 = vmatpush.bf16.msra.mxu0 0
  %1663 = vmatpush.bf16.msra.mxu0 0
  %1664 = vmatpush.bf16.msra.mxu0 0
  %1665 = vmatpush.bf16.msra.mxu0 0
  %1666 = vmatpush.bf16.msra.mxu0 0
  %1667 = vmatpush.bf16.msra.mxu0 %v1654
  %1668 = vmatpush.bf16.msra.mxu0 %v1653
  %1669 = vmatmul.bf16.gmra.mxu0 %v1657
  %v1670 = vpop.f32.mrf.mxu0
  %v1671 = vadd.f32 0.0, %v1670
  %v1672 = vpop.f32.mrf.mxu0
  %v1673 = vadd.f32 0.0, %v1672
  %1674 = vmatmul.bf16.gmra.mxu0 %v1659
  %v1675 = vpop.f32.mrf.mxu0
  %v1676 = vadd.f32 0.0, %v1675
  %v1677 = vpop.f32.mrf.mxu0
  %v1678 = vadd.f32 0.0, %v1677
  %1679 = vdwg.mxu0
  %v1684 = vunpack.c.l.b16 %v1552
  %v1685 = vunpack.c.l.b16 %v1553
  %v1686 = vunpack.c.l.b16 %v1554
  %v1687 = vunpack.c.l.b16 %v1555
  %v1688 = vpack.c.b16 %v1685, %v1684
  %v1689 = vpack.c.b16 %v1687, %v1686
  %v1693 = vsel %vm234, %v1623, 0
  %v1696 = vsel %vm234, %v1624, 0
  %1698 = vmatpush.bf16.msra.mxu0 0
  %1699 = vmatpush.bf16.msra.mxu0 0
  %1700 = vmatpush.bf16.msra.mxu0 0
  %1701 = vmatpush.bf16.msra.mxu0 0
  %1702 = vmatpush.bf16.msra.mxu0 0
  %1703 = vmatpush.bf16.msra.mxu0 0
  %1704 = vmatpush.bf16.msra.mxu0 %v1689
  %1705 = vmatpush.bf16.msra.mxu0 %v1688
  %1706 = vmatmul.bf16.gmra.mxu0 %v1693
  %v1707 = vpop.f32.mrf.mxu0
  %v1708 = vadd.f32 %v1671, %v1707
  %v1709 = vpop.f32.mrf.mxu0
  %v1710 = vadd.f32 %v1673, %v1709
  %1711 = vmatmul.bf16.gmra.mxu0 %v1696
  %v1712 = vpop.f32.mrf.mxu0
  %v1713 = vadd.f32 %v1676, %v1712
  %v1714 = vpop.f32.mrf.mxu0
  %v1715 = vadd.f32 %v1678, %v1714
  %1716 = vdwg.mxu0
  %v1721 = vunpack.c.l.b16 %v1560
  %v1722 = vunpack.c.l.b16 %v1561
  %v1723 = vunpack.c.l.b16 %v1562
  %v1724 = vunpack.c.l.b16 %v1563
  %v1725 = vpack.c.b16 %v1722, %v1721
  %v1726 = vpack.c.b16 %v1724, %v1723
  %v1730 = vsel %vm234, %v1643, 0
  %v1733 = vsel %vm234, %v1644, 0
  %1735 = vmatpush.bf16.msra.mxu0 0
  %1736 = vmatpush.bf16.msra.mxu0 0
  %1737 = vmatpush.bf16.msra.mxu0 0
  %1738 = vmatpush.bf16.msra.mxu0 0
  %1739 = vmatpush.bf16.msra.mxu0 0
  %1740 = vmatpush.bf16.msra.mxu0 0
  %1741 = vmatpush.bf16.msra.mxu0 %v1726
  %1742 = vmatpush.bf16.msra.mxu0 %v1725
  %1743 = vmatmul.bf16.gmra.mxu0 %v1730
  %v1744 = vpop.f32.mrf.mxu0
  %v1745 = vadd.f32 0.0, %v1744
  %v1746 = vpop.f32.mrf.mxu0
  %v1747 = vadd.f32 0.0, %v1746
  %1748 = vmatmul.bf16.gmra.mxu0 %v1733
  %v1749 = vpop.f32.mrf.mxu0
  %v1750 = vadd.f32 0.0, %v1749
  %v1751 = vpop.f32.mrf.mxu0
  %v1752 = vadd.f32 0.0, %v1751
  %1753 = vdwg.mxu0
  %v1754 = vadd.f32 %v1708, %v1745
  %v1755 = vadd.f32 %v1710, %v1747
  %v1756 = vadd.f32 %v1713, %v1750
  %v1757 = vadd.f32 %v1715, %v1752
  %v1759 = vperm.slane %v1565, 0
  %v1761 = vadd.f32 %v1754, %v1759
  %v1762 = vadd.f32 %v1755, %v1759
  %v1763 = vadd.f32 %v1756, %v1759
  %v1764 = vadd.f32 %v1757, %v1759
  %v1765 = vmul.f32 %v1761, 0.5
  %v1766 = vmul.f32 %v1762, 0.5
  %v1767 = vmul.f32 %v1763, 0.5
  %v1768 = vmul.f32 %v1764, 0.5
  %v1769 = vmul.f32 %v1761, 0.044715
  %v1770 = vmul.f32 %v1762, 0.044715
  %v1771 = vmul.f32 %v1763, 0.044715
  %v1772 = vmul.f32 %v1764, 0.044715
  %v1773 = vmul.f32 %v1769, %v1761
  %v1774 = vmul.f32 %v1770, %v1762
  %v1775 = vmul.f32 %v1771, %v1763
  %v1776 = vmul.f32 %v1772, %v1764
  %v1777 = vmul.f32 %v1773, %v1761
  %v1778 = vmul.f32 %v1774, %v1762
  %v1779 = vmul.f32 %v1775, %v1763
  %v1780 = vmul.f32 %v1776, %v1764
  %v1781 = vadd.f32 %v1761, %v1777
  %v1782 = vadd.f32 %v1762, %v1778
  %v1783 = vadd.f32 %v1763, %v1779
  %v1784 = vadd.f32 %v1764, %v1780
  %v1785 = vmul.f32 %v1781, 0.7978846
  %v1786 = vmul.f32 %v1782, 0.7978846
  %v1787 = vmul.f32 %v1783, 0.7978846
  %v1788 = vmul.f32 %v1784, 0.7978846
  %v1789 = vtanh.pop %v1785
  %v1790 = vtanh.pop %v1786
  %v1791 = vtanh.pop %v1787
  %v1792 = vtanh.pop %v1788
  %v1793 = vadd.f32 %v1789, 1.0
  %v1794 = vadd.f32 %v1790, 1.0
  %v1795 = vadd.f32 %v1791, 1.0
  %v1796 = vadd.f32 %v1792, 1.0
  %v1797 = vmul.f32 %v1765, %v1793
  %v1798 = vmul.f32 %v1766, %v1794
  %v1799 = vmul.f32 %v1767, %v1795
  %v1800 = vmul.f32 %v1768, %v1796
  %v1801 = vpack.c.bf16 %v1797, %v1797
  %v1802 = vpack.c.bf16 %v1798, %v1798
  %v1803 = vpack.c.bf16 %v1799, %v1799
  %v1804 = vpack.c.bf16 %v1800, %v1800
  %v1807 = vunpack.c.l.b16 %v1802
  %v1808 = vunpack.c.l.b16 %v1804
  %v1809 = vpack.c.b16 %v1807, %v1807
  %v1810 = vpack.c.b16 %v1808, %v1808
  %v1812 = vshrl.u32 %v1809, 16
  %v1814 = vrot.slane %v1812, 3
  %v1816 = vshrl.u32 %v1810, 16
  %v1818 = vrot.slane %v1816, 3
  %v1823 = vunpack.c.l.b16 %v1801
  %v1824 = vunpack.c.l.b16 %v1803
  %v1825 = vpack.c.b16 %v1807, %v1823
  %v1826 = vpack.c.b16 %v1808, %v1824
  %v1828 = vshrl.u32 %v1825, 16
  %v1830 = vrot.slane %v1828, 7
  %v1831 = vshll.u32 %v1825, 16
  %v1833 = vor.u32 %v1830, %v1831
  %v1835 = vshrl.u32 %v1826, 16
  %v1837 = vrot.slane %v1835, 7
  %v1838 = vshll.u32 %v1826, 16
  %v1840 = vor.u32 %v1837, %v1838
  %v1843 = vsel %vm196, %v1814, %v1833
  %v1844 = vsel %vm196, %v1818, %v1840
  %v1845 = vrot.slane %v1831, 1
  %v1846 = vor.u32 %v1828, %v1845
  %v1847 = vrot.slane %v1838, 1
  %v1848 = vor.u32 %v1835, %v1847
  %v1851 = vpack.c.b16 %v1823, %v1823
  %v1852 = vpack.c.b16 %v1824, %v1824
  %v1854 = vshll.u32 %v1851, 16
  %v1856 = vrot.slane %v1854, 1
  %v1858 = vshll.u32 %v1852, 16
  %v1860 = vrot.slane %v1858, 1
  %v1863 = vsel %vm219, %v1846, %v1856
  %v1864 = vsel %vm219, %v1848, %v1860
  %v1869 = vunpack.c.l.b16 %v1571
  %v1870 = vunpack.c.l.b16 %v1572
  %v1871 = vunpack.c.l.b16 %v1573
  %v1872 = vunpack.c.l.b16 %v1574
  %v1873 = vpack.c.b16 %v1870, %v1869
  %v1874 = vpack.c.b16 %v1872, %v1871
  %v1877 = vsel %vm234, %v1825, 0
  %v1879 = vsel %vm234, %v1826, 0
  %1881 = vmatpush.bf16.msra.mxu0 0
  %1882 = vmatpush.bf16.msra.mxu0 0
  %1883 = vmatpush.bf16.msra.mxu0 0
  %1884 = vmatpush.bf16.msra.mxu0 0
  %1885 = vmatpush.bf16.msra.mxu0 0
  %1886 = vmatpush.bf16.msra.mxu0 0
  %1887 = vmatpush.bf16.msra.mxu0 %v1874
  %1888 = vmatpush.bf16.msra.mxu0 %v1873
  %1889 = vmatmul.bf16.gmra.mxu0 %v1877
  %v1890 = vpop.f32.mrf.mxu0
  %v1891 = vadd.f32 0.0, %v1890
  %v1892 = vpop.f32.mrf.mxu0
  %v1893 = vadd.f32 0.0, %v1892
  %1894 = vmatmul.bf16.gmra.mxu0 %v1879
  %v1895 = vpop.f32.mrf.mxu0
  %v1896 = vadd.f32 0.0, %v1895
  %v1897 = vpop.f32.mrf.mxu0
  %v1898 = vadd.f32 0.0, %v1897
  %1899 = vdwg.mxu0
  %v1904 = vunpack.c.l.b16 %v1567
  %v1905 = vunpack.c.l.b16 %v1568
  %v1906 = vunpack.c.l.b16 %v1569
  %v1907 = vunpack.c.l.b16 %v1570
  %v1908 = vpack.c.b16 %v1905, %v1904
  %v1909 = vpack.c.b16 %v1907, %v1906
  %v1913 = vsel %vm234, %v1843, 0
  %v1916 = vsel %vm234, %v1844, 0
  %1918 = vmatpush.bf16.msra.mxu0 0
  %1919 = vmatpush.bf16.msra.mxu0 0
  %1920 = vmatpush.bf16.msra.mxu0 0
  %1921 = vmatpush.bf16.msra.mxu0 0
  %1922 = vmatpush.bf16.msra.mxu0 0
  %1923 = vmatpush.bf16.msra.mxu0 0
  %1924 = vmatpush.bf16.msra.mxu0 %v1909
  %1925 = vmatpush.bf16.msra.mxu0 %v1908
  %1926 = vmatmul.bf16.gmra.mxu0 %v1913
  %v1927 = vpop.f32.mrf.mxu0
  %v1928 = vadd.f32 %v1891, %v1927
  %v1929 = vpop.f32.mrf.mxu0
  %v1930 = vadd.f32 %v1893, %v1929
  %1931 = vmatmul.bf16.gmra.mxu0 %v1916
  %v1932 = vpop.f32.mrf.mxu0
  %v1933 = vadd.f32 %v1896, %v1932
  %v1934 = vpop.f32.mrf.mxu0
  %v1935 = vadd.f32 %v1898, %v1934
  %1936 = vdwg.mxu0
  %v1941 = vunpack.c.l.b16 %v1575
  %v1942 = vunpack.c.l.b16 %v1576
  %v1943 = vunpack.c.l.b16 %v1577
  %v1944 = vunpack.c.l.b16 %v1578
  %v1945 = vpack.c.b16 %v1942, %v1941
  %v1946 = vpack.c.b16 %v1944, %v1943
  %v1950 = vsel %vm234, %v1863, 0
  %v1953 = vsel %vm234, %v1864, 0
  %1955 = vmatpush.bf16.msra.mxu0 0
  %1956 = vmatpush.bf16.msra.mxu0 0
  %1957 = vmatpush.bf16.msra.mxu0 0
  %1958 = vmatpush.bf16.msra.mxu0 0
  %1959 = vmatpush.bf16.msra.mxu0 0
  %1960 = vmatpush.bf16.msra.mxu0 0
  %1961 = vmatpush.bf16.msra.mxu0 %v1946
  %1962 = vmatpush.bf16.msra.mxu0 %v1945
  %1963 = vmatmul.bf16.gmra.mxu0 %v1950
  %v1964 = vpop.f32.mrf.mxu0
  %v1965 = vadd.f32 0.0, %v1964
  %v1966 = vpop.f32.mrf.mxu0
  %v1967 = vadd.f32 0.0, %v1966
  %1968 = vmatmul.bf16.gmra.mxu0 %v1953
  %v1969 = vpop.f32.mrf.mxu0
  %v1970 = vadd.f32 0.0, %v1969
  %v1971 = vpop.f32.mrf.mxu0
  %v1972 = vadd.f32 0.0, %v1971
  %1973 = vdwg.mxu0
  %v1974 = vadd.f32 %v1928, %v1965
  %v1975 = vadd.f32 %v1930, %v1967
  %v1976 = vadd.f32 %v1933, %v1970
  %v1977 = vadd.f32 %v1935, %v1972
  %v1979 = vperm.slane %v1580, 0
  %v1981 = vadd.f32 %v1974, %v1979
  %v1982 = vadd.f32 %v1975, %v1979
  %v1983 = vadd.f32 %v1976, %v1979
  %v1984 = vadd.f32 %v1977, %v1979
  %v1985 = vadd.f32 %v1981, %v1547
  %v1986 = vadd.f32 %v1982, %v1548
  %v1987 = vadd.f32 %v1983, %v1549
  %v1988 = vadd.f32 %v1984, %v1550
  %v1989 = vmul.f32 %v1985, 0.5
  %v1990 = vmul.f32 %v1986, 0.5
  %v1991 = vmul.f32 %v1987, 0.5
  %v1992 = vmul.f32 %v1988, 0.5
  %v1993 = vmul.f32 %v1985, 0.044715
  %v1994 = vmul.f32 %v1986, 0.044715
  %v1995 = vmul.f32 %v1987, 0.044715
  %v1996 = vmul.f32 %v1988, 0.044715
  %v1997 = vmul.f32 %v1993, %v1985
  %v1998 = vmul.f32 %v1994, %v1986
  %v1999 = vmul.f32 %v1995, %v1987
  %v2000 = vmul.f32 %v1996, %v1988
  %v2001 = vmul.f32 %v1997, %v1985
  %v2002 = vmul.f32 %v1998, %v1986
  %v2003 = vmul.f32 %v1999, %v1987
  %v2004 = vmul.f32 %v2000, %v1988
  %v2005 = vadd.f32 %v1985, %v2001
  %v2006 = vadd.f32 %v1986, %v2002
  %v2007 = vadd.f32 %v1987, %v2003
  %v2008 = vadd.f32 %v1988, %v2004
  %v2009 = vmul.f32 %v2005, 0.7978846
  %v2010 = vmul.f32 %v2006, 0.7978846
  %v2011 = vmul.f32 %v2007, 0.7978846
  %v2012 = vmul.f32 %v2008, 0.7978846
  %v2013 = vtanh.pop %v2009
  %v2014 = vtanh.pop %v2010
  %v2015 = vtanh.pop %v2011
  %v2016 = vtanh.pop %v2012
  %v2017 = vadd.f32 %v2013, 1.0
  %v2018 = vadd.f32 %v2014, 1.0
  %v2019 = vadd.f32 %v2015, 1.0
  %v2020 = vadd.f32 %v2016, 1.0
  %v2021 = vmul.f32 %v1989, %v2017
  %v2022 = vmul.f32 %v1990, %v2018
  %v2023 = vmul.f32 %v1991, %v2019
  %v2024 = vmul.f32 %v1992, %v2020
  %v2025 = vpack.c.bf16 %v2022, %v2021
  %v2026 = vpack.c.bf16 %v2024, %v2023
  %v2027 = vld [vmem:[%s7] sm:$0xf]
  %v2028 = vld [vmem:[%s7 + $0x4] sm:$0xf]
  %v2029 = vld [vmem:[%s7 + $0x8] sm:$0xf]
  %v2030 = vld [vmem:[%s7 + $0xc] sm:$0xf]
  %v2031 = vld [vmem:[%s8] sm:$0x1]
  %v2033 = vperm.slane %v2031, 0
  %v2039 = vunpack.c.l.b16 %v2027
  %v2040 = vunpack.c.l.b16 %v2028
  %v2041 = vunpack.c.l.b16 %v2029
  %v2042 = vunpack.c.l.b16 %v2030
  %v2043 = vpack.c.b16 %v2040, %v2039
  %v2044 = vpack.c.b16 %v2042, %v2041
  %v2048 = vsel %vm234, %v2025, 0
  %v2051 = vsel %vm234, %v2026, 0
  %2053 = vmatpush.bf16.msra.mxu0 0
  %2054 = vmatpush.bf16.msra.mxu0 0
  %2055 = vmatpush.bf16.msra.mxu0 0
  %2056 = vmatpush.bf16.msra.mxu0 0
  %2057 = vmatpush.bf16.msra.mxu0 0
  %2058 = vmatpush.bf16.msra.mxu0 0
  %2059 = vmatpush.bf16.msra.mxu0 %v2044
  %2060 = vmatpush.bf16.msra.mxu0 %v2043
  %2061 = vmatmul.bf16.gmra.mxu0 %v2048
  %v2062 = vpop.f32.mrf.mxu0
  %v2063 = vadd.f32 %v2033, %v2062
  %v2064 = vpop.f32.mrf.mxu0
  %v2065 = vadd.f32 %v2033, %v2064
  %2066 = vmatmul.bf16.gmra.mxu0 %v2051
  %v2067 = vpop.f32.mrf.mxu0
  %v2068 = vadd.f32 %v2033, %v2067
  %v2069 = vpop.f32.mrf.mxu0
  %v2070 = vadd.f32 %v2033, %v2069
  %2071 = vdwg.mxu0
  %vm2072 = vcmask 31744
  %2073 = vst.msk [vmem:[%s9] sm:$0xff] %vm2072, %v2063
  %2074 = vst.msk [vmem:[%s9 + $0x8] sm:$0xff] %vm2072, %v2065
  %2075 = vst.msk [vmem:[%s9 + $0x10] sm:$0xff] %vm2072, %v2068
  %2076 = vst.msk [vmem:[%s9 + $0x18] sm:$0xff] %vm2072, %v2070
  // Predicated region
  $region38: #{tpu_custom_call.1} parent=0 // pred_check
    _
  $region39: #{tpu_custom_call.1} parent=0 // pred_check_branch
    %2078 = sbr.rel (0) target = $region41
  $region40: #{tpu_custom_call.1} parent=0 // pred_region
    _
  $region41: #{tpu_custom_call.1} parent=0 // pred_fallthru
    _
  // Predicated region
  $region42: #{tpu_custom_call.1} parent=0 // pred_check
    _
  $region43: #{tpu_custom_call.1} parent=0 // pred_check_branch
    %2080 = sbr.rel (0) target = $region45
  $region44: #{tpu_custom_call.1} parent=0 // pred_region
    _
  $region45: #{tpu_custom_call.1} parent=0 // pred_fallthru
    _

</llo_original>
